<compile_context>
chip_gen: v7x
topology: tpu7x:2x2x1
jax: 0.10.0
libtpu: 0.0.40
codegen_flags: <defaults>
</compile_context>

<pallas_src>
import functools

import jax
import jax.numpy as jnp
from jax.experimental import pallas as pl
from jax.experimental.pallas import tpu as pltpu


def _ciassd_loss_kernel(cls_ref, box_ref, dir_ref, tpn_ref, ayaw_ref, out_ref,
                        *, pos_cls_weight, gamma, alpha, reg_sigma, dir_offset,
                        hw, tn, needs_mask):
    """Per-(batch, anchor, lane-tile) partial sums.

    Block shapes:
      cls_ref  : (1, 1, 1, TN)   classification logits
      box_ref  : (1, 1, 7, TN)   box regression predictions
      dir_ref  : (1, 1, 2, TN)   direction logits
      tpn_ref  : (1, 1, 9, TN)   rows 0..6 reg targets, 7 pos, 8 neg
      ayaw_ref : (1, 1, TN)      anchor yaw (shared across the batch)
      out_ref  : (1, 1, 1, 4)    [cls_sum, reg_sum, dir_sum, pos_count]
    """
    f32 = jnp.float32
    n = pl.program_id(2)

    @pl.when(n == 0)
    def _init():
        out_ref[...] = jnp.zeros_like(out_ref)

    if needs_mask:                              # trace-time: ragged lane tail
        lane = jax.lax.broadcasted_iota(jnp.int32, (1, tn), 1)
        valid = (n * tn + lane) < hw

        def sane(v):                            # zero the out-of-range lanes
            return jnp.where(valid, v, 0.0)
    else:
        def sane(v):
            return v

    pos = sane(tpn_ref[0, 0, 7:8, :])           # (1, TN)
    neg = sane(tpn_ref[0, 0, 8:9, :])
    x = sane(cls_ref[0, 0])                     # (1, TN) classification logits

    positives = pos > 0.0
    negatives = neg > 0.0
    cared = jnp.logical_or(positives, negatives).astype(f32)
    cls_labls = pos * cared                     # general (non-binary-safe) form
    pos_f = positives.astype(f32)
    neg_f = negatives.astype(f32)

    # -------- classification: sigmoid focal loss (unnormalized sums) --------
    w_cls = pos_f * pos_cls_weight + neg_f
    e = jnp.exp(-jnp.abs(x))                    # shared by BCE term and sigmoid
    # NOTE: log1p(e) would be marginally more accurate for |x| >> 1 but has no
    # reliable Mosaic lowering; abs error of log(1 + e) is < 1e-7 here.
    per_entry = jnp.maximum(x, 0.0) - x * cls_labls + jnp.log(1.0 + e)
    inv_1pe = pl.reciprocal(1.0 + e, approx=True)          # EUP, not VPU divide
    prob = jnp.where(x >= 0.0, 1.0, e) * inv_1pe           # sigmoid(x)
    p_t = cls_labls * prob + (1.0 - cls_labls) * (1.0 - prob)
    one_m = 1.0 - p_t
    if gamma == 0.0:                            # trace-time pow() specialization
        modulating = jnp.ones_like(one_m)
    elif float(gamma).is_integer() and 1.0 <= gamma <= 4.0:
        modulating = one_m
        for _ in range(int(gamma) - 1):
            modulating = modulating * one_m
    else:
        modulating = jnp.exp(
            gamma * jnp.log(jnp.maximum(one_m, jnp.finfo(f32).tiny)))
    alpha_w = cls_labls * alpha + (1.0 - cls_labls) * (1.0 - alpha)
    cls_elem = modulating * alpha_w * per_entry * w_cls
    cls_s = jnp.sum(cls_elem, axis=1, keepdims=True)       # (1, 1)
    cnt_s = jnp.sum(pos_f, axis=1, keepdims=True)

    # -------- regression: sin-encoded weighted smooth-L1 --------------------
    sigma2 = reg_sigma * reg_sigma

    def smooth_l1(abs_diff):
        lt = (abs_diff <= 1.0 / sigma2).astype(f32)
        quad = 0.5 * jnp.square(abs_diff * reg_sigma)
        lin = abs_diff - 0.5 / sigma2
        return lt * quad + (1.0 - lt) * lin

    # Per-channel running sum: no (6, TN) live intermediate, no sublane reduce.
    reg_per_anchor = jnp.zeros_like(x)
    for c in range(6):
        d = jnp.abs(sane(box_ref[0, 0, c:c + 1, :]) -
                    sane(tpn_ref[0, 0, c:c + 1, :]))
        reg_per_anchor = reg_per_anchor + smooth_l1(d)
    rp_yaw = sane(box_ref[0, 0, 6:7, :])
    rt_yaw = sane(tpn_ref[0, 0, 6:7, :])
    # sin-encoding: pred_enc - gt_enc = sin(a)cos(b) - cos(a)sin(b) = sin(a - b)
    rad_gt = jnp.cos(rp_yaw) * jnp.sin(rt_yaw)              # reused by dir
    reg_per_anchor = reg_per_anchor + smooth_l1(jnp.abs(jnp.sin(rp_yaw - rt_yaw)))
    reg_s = jnp.sum(reg_per_anchor * pos_f, axis=1, keepdims=True)

    # -------- direction: 2-class softmax CE == softplus(logit margin) -------
    rot_gt = rad_gt + sane(ayaw_ref[0])
    dir_is1 = (rot_gt - dir_offset) > 0.0
    l0 = sane(dir_ref[0, 0, 0:1, :])
    l1 = sane(dir_ref[0, 0, 1:2, :])
    margin = jnp.where(dir_is1, l0 - l1, l1 - l0)           # logsumexp - picked
    ce = jnp.maximum(margin, 0.0) + jnp.log(1.0 + jnp.exp(-jnp.abs(margin)))
    # dir weight mask (cls_labls > 0) == positives exactly, so reuse pos_f and
    # the positive count as the direction-loss normalizer (no extra reduce).
    dir_s = jnp.sum(ce * pos_f, axis=1, keepdims=True)

    out_ref[0, 0, :, 0:1] += cls_s
    out_ref[0, 0, :, 1:2] += reg_s
    out_ref[0, 0, :, 2:3] += dir_s
    out_ref[0, 0, :, 3:4] += cnt_s


def _pick_lane_tile(hw, padded_rows=48, vmem_budget_bytes=8 << 20, cap=8192):
    """Largest lane tile keeping double-buffered f32 inputs inside the budget."""
    tn_vmem = (vmem_budget_bytes // (2 * padded_rows * 4)) // 128 * 128
    tn_cap = max(128, min(cap, tn_vmem))
    if hw <= tn_cap:
        return hw, 1, False          # one full-width tile (any hw is legal)
    nt = pl.cdiv(hw, tn_cap)
    return tn_cap, nt, (hw % tn_cap != 0)


def ciassd_loss(cls_preds_nchw, box_preds_nchw, dir_preds_nchw, iou_preds_nchw,
                pos_equal_one, neg_equal_one, targets, anchor_box, args,
                lane_tile_cap=8192):
    del iou_preds_nchw  # TODO(synk): IoU branch not implemented (see below)
    box_code = 7
    B, _, H, W = cls_preds_nchw.shape
    A = pos_equal_one.shape[-1]
    HW = H * W
    f32 = jnp.float32

    # Prediction tensors: native NCHW order -> pure reshapes (no HBM pass).
    cls_p = cls_preds_nchw.reshape(B, A, 1, HW).astype(f32)
    box_p = box_preds_nchw.reshape(B, A, box_code, HW).astype(f32)
    dir_p = dir_preds_nchw.reshape(B, A, 2, HW).astype(f32)

    # Target-side tensors: single transpose+concat pass into an anchor-major
    # (B, A, 9, HW) stack so only one extra DMA stream (well-filled sublanes).
    tgt_am = jnp.transpose(targets.reshape(B, H, W, A, box_code),
                           (0, 3, 4, 1, 2)).reshape(B, A, box_code, HW)
    pos_am = jnp.transpose(pos_equal_one, (0, 3, 1, 2)).reshape(B, A, 1, HW)
    neg_am = jnp.transpose(neg_equal_one, (0, 3, 1, 2)).reshape(B, A, 1, HW)
    tpn = jnp.concatenate([tgt_am.astype(f32), pos_am.astype(f32),
                           neg_am.astype(f32)], axis=2)
    anchor_yaw = jnp.transpose(
        anchor_box.reshape(H, W, A, box_code)[..., box_code - 1],
        (2, 0, 1)).reshape(A, 1, HW).astype(f32)

    TN, nt, needs_mask = _pick_lane_tile(HW, cap=lane_tile_cap)

    kernel = functools.partial(
        _ciassd_loss_kernel,
        pos_cls_weight=float(args['pos_cls_weight']),
        gamma=float(args['cls']['gamma']),
        alpha=float(args['cls']['alpha']),
        reg_sigma=float(args['reg']['sigma']),
        # TODO(synk): dir_offset / num_bins from an explicit dir config are
        # ignored (the reference calls get_direction_target with its defaults).
        dir_offset=0.0,
        hw=HW, tn=TN, needs_mask=needs_mask)

    partials = pl.pallas_call(
        kernel,
        out_shape=jax.ShapeDtypeStruct((B, A, 1, 4), jnp.float32),
        grid=(B, A, nt),
        in_specs=[
            pl.BlockSpec((1, 1, 1, TN), lambda b, a, n: (b, a, 0, n)),
            pl.BlockSpec((1, 1, box_code, TN), lambda b, a, n: (b, a, 0, n)),
            pl.BlockSpec((1, 1, 2, TN), lambda b, a, n: (b, a, 0, n)),
            pl.BlockSpec((1, 1, box_code + 2, TN), lambda b, a, n: (b, a, 0, n)),
            pl.BlockSpec((1, 1, TN), lambda b, a, n: (a, 0, n)),
        ],
        out_specs=pl.BlockSpec((1, 1, 1, 4), lambda b, a, n: (b, a, 0, 0)),
        compiler_params=pltpu.CompilerParams(
            dimension_semantics=("parallel", "parallel", "arbitrary"),
            vmem_limit_bytes=32 * 1024 * 1024),
    )(cls_p, box_p, dir_p, tpn, anchor_yaw)

    # Tiny finalization in plain JAX: per-batch normalizers + loss weights.
    per_b = jnp.sum(partials.reshape(B, A, 4), axis=1)      # (B, 4)
    inv_pos = 1.0 / jnp.maximum(per_b[:, 3], 1.0)
    cls_loss_reduced = jnp.sum(per_b[:, 0] * inv_pos) * args['cls']['weight'] / B
    reg_loss_reduced = jnp.sum(per_b[:, 1] * inv_pos) * args['reg']['weight'] / B
    dir_loss_reduced = jnp.sum(per_b[:, 2] * inv_pos) * args['dir']['weight'] / B
    # TODO(synk): IoU loss branch (VoxelPostprocessor.delta_to_boxes3d +
    # aligned_boxes_iou3d_gpu + boolean-mask gather of a dynamic number of
    # positives) relies on helpers outside this module; omitted.
    iou_loss_reduced = jnp.float32(0.0)
    total = cls_loss_reduced + reg_loss_reduced + dir_loss_reduced + iou_loss_reduced
    return total, {'total_loss': total, 'cls_loss': cls_loss_reduced,
                   'reg_loss': reg_loss_reduced, 'dir_loss': dir_loss_reduced,
                   'iou_loss': iou_loss_reduced}


def _reference_loss(cls_preds_nchw, box_preds_nchw, dir_preds_nchw,
                    pos_equal_one, neg_equal_one, targets, anchor_box, args):
    """Pure-JAX mirror of the PyTorch forward (minus the IoU branch)."""
    B = cls_preds_nchw.shape[0]
    cls_labls = pos_equal_one.reshape(B, -1, 1)
    positives = cls_labls > 0
    negatives = neg_equal_one.reshape(B, -1, 1) > 0
    cared = jnp.logical_or(positives, negatives)
    cls_labls = cls_labls * cared.astype(cls_labls.dtype)
    pos_norm = jnp.sum(positives, axis=1, keepdims=True).astype(jnp.float32)
    cls_preds = jnp.transpose(cls_preds_nchw, (0, 2, 3, 1)).reshape(B, -1, 1)
    cls_w = (positives * args['pos_cls_weight'] + negatives * 1.0)
    cls_w = cls_w / jnp.maximum(pos_norm, 1.0)
    g, a = args['cls']['gamma'], args['cls']['alpha']
    per_entry = (jnp.maximum(cls_preds, 0) - cls_preds * cls_labls
                 + jnp.log1p(jnp.exp(-jnp.abs(cls_preds))))
    prob = jax.nn.sigmoid(cls_preds)
    p_t = cls_labls * prob + (1 - cls_labls) * (1 - prob)
    cls_loss = (jnp.power(1 - p_t, g)
                * (cls_labls * a + (1 - cls_labls) * (1 - a))
                * per_entry * cls_w)
    cls_red = jnp.sum(cls_loss) * args['cls']['weight'] / B

    reg_w = positives / jnp.maximum(pos_norm, 1.0)
    rp = jnp.transpose(box_preds_nchw, (0, 2, 3, 1)).reshape(B, -1, 7)
    rt = targets.reshape(B, -1, 7)
    rad_p = jnp.sin(rp[..., -1:]) * jnp.cos(rt[..., -1:])
    rad_t = jnp.cos(rp[..., -1:]) * jnp.sin(rt[..., -1:])
    rp = jnp.concatenate([rp[..., :-1], rad_p], -1)
    rt = jnp.concatenate([rt[..., :-1], rad_t], -1)
    s = args['reg']['sigma']
    ad = jnp.abs(rp - rt)
    lt = (ad <= 1.0 / s ** 2).astype(jnp.float32)
    reg_loss = (lt * 0.5 * jnp.square(ad * s)
                + (ad - 0.5 / s ** 2) * (1.0 - lt)) * reg_w
    reg_red = jnp.sum(reg_loss) * args['reg']['weight'] / B

    anchors = anchor_box.reshape(1, -1, 7)
    rot_gt = rt[..., -1] + anchors[..., -1]
    dir_t = (rot_gt > 0).astype(jnp.int32)
    dir_logits = jnp.transpose(dir_preds_nchw, (0, 2, 3, 1)).reshape(B, -1, 2)
    lse = jax.nn.logsumexp(dir_logits, axis=-1)
    picked = jnp.take_along_axis(dir_logits, dir_t[..., None], axis=-1)[..., 0]
    ce = lse - picked
    dw = (cls_labls > 0).astype(jnp.float32).reshape(B, -1)
    dw = dw / jnp.maximum(jnp.sum(dw, -1, keepdims=True), 1.0)
    dir_red = jnp.sum(ce * dw) * args['dir']['weight'] / B
    return cls_red + reg_red + dir_red


def _make_inputs(key, B, H, W, A):
    ks = jax.random.split(key, 8)
    cls_preds = jax.random.normal(ks[0], (B, A * 1, H, W), jnp.float32)
    box_preds = 0.3 * jax.random.normal(ks[1], (B, A * 7, H, W), jnp.float32)
    dir_preds = jax.random.normal(ks[2], (B, A * 2, H, W), jnp.float32)
    iou_preds = jax.random.normal(ks[3], (B, A * 1, H, W), jnp.float32)
    pos_eo = jax.random.bernoulli(ks[4], 0.15, (B, H, W, A)).astype(jnp.float32)
    neg_eo = ((1.0 - pos_eo)
              * jax.random.bernoulli(ks[5], 0.7, (B, H, W, A)).astype(jnp.float32))
    tgts = 0.5 * jax.random.normal(ks[6], (B, H, W, A * 7), jnp.float32)
    anchor_box = jax.random.normal(ks[7], (H, W, A, 7), jnp.float32)
    return cls_preds, box_preds, dir_preds, iou_preds, pos_eo, neg_eo, tgts, anchor_box


if __name__ == "__main__":
    args = {
        'pos_cls_weight': 50.0,
        'encode_rad_error_by_sin': True,
        'cls': {'gamma': 2.0, 'alpha': 0.25, 'weight': 1.0},
        'reg': {'sigma': 3.0, 'weight': 2.0},
        'iou': {'sigma': 3.0, 'weight': 1.0},
        'dir': {'weight': 0.2},
    }

    # --- case 1: main shapes, single full-width lane tile -------------------
    B, H, W, A = 2, 16, 16, 2                  # HW = 256 per (batch, anchor)
    inputs = _make_inputs(jax.random.PRNGKey(0), B, H, W, A)
    total, _ = ciassd_loss(*inputs, args)
    total = jax.block_until_ready(total)
    ref_total = jax.block_until_ready(
        _reference_loss(inputs[0], inputs[1], inputs[2],
                        inputs[4], inputs[5], inputs[6], inputs[7], args))
    assert jnp.allclose(total, ref_total, rtol=1e-3, atol=1e-4), \
        (float(total), float(ref_total))

    # --- case 2: ragged lane axis (HW=130, TN=128) exercises cdiv + tail mask
    B2, H2, W2, A2 = 2, 10, 13, 2
    inputs2 = _make_inputs(jax.random.PRNGKey(1), B2, H2, W2, A2)
    total2, _ = ciassd_loss(*inputs2, args, lane_tile_cap=128)
    total2 = jax.block_until_ready(total2)
    ref_total2 = jax.block_until_ready(
        _reference_loss(inputs2[0], inputs2[1], inputs2[2],
                        inputs2[4], inputs2[5], inputs2[6], inputs2[7], args))
    assert jnp.allclose(total2, ref_total2, rtol=1e-3, atol=1e-4), \
        (float(total2), float(ref_total2))

    print("KERNEL_OK")
</pallas_src>

<mosaic_0001>
module attributes {stable_mosaic.version = 11 : i64} {
  func.func @_ciassd_loss_kernel(%arg0: i32, %arg1: i32, %arg2: i32, %arg3: memref<1x1x1x256xf32, #tpu.memory_space<vmem>>, %arg4: memref<1x1x7x256xf32, #tpu.memory_space<vmem>>, %arg5: memref<1x1x2x256xf32, #tpu.memory_space<vmem>>, %arg6: memref<1x1x9x256xf32, #tpu.memory_space<vmem>>, %arg7: memref<1x1x256xf32, #tpu.memory_space<vmem>>, %arg8: memref<1x1x1x4xf32, #tpu.memory_space<vmem>>) attributes {dimension_semantics = [#tpu.dimension_semantics<parallel>, #tpu.dimension_semantics<parallel>, #tpu.dimension_semantics<arbitrary>], iteration_bounds = array<i64: 2, 2, 1>, scalar_prefetch = 0 : i64, scratch_operands = 0 : i64, tpu.core_type = #tpu.core_type<tc>, window_params = [{transform_indices = @transform_0, window_bounds = array<i64: 1, 1, 1, 256>}, {transform_indices = @transform_1, window_bounds = array<i64: 1, 1, 7, 256>}, {transform_indices = @transform_2, window_bounds = array<i64: 1, 1, 2, 256>}, {transform_indices = @transform_3, window_bounds = array<i64: 1, 1, 9, 256>}, {transform_indices = @transform_4, window_bounds = array<i64: 1, 1, 256>}, {transform_indices = @transform_5, window_bounds = array<i64: 1, 1, 1, 4>}]} {
    %c0_i32 = arith.constant 0 : i32
    %0 = arith.cmpi eq, %arg2, %c0_i32 : i32
    %1 = arith.extui %0 : i1 to i32
    %c0_i32_0 = arith.constant 0 : i32
    %2 = arith.cmpi ne, %1, %c0_i32_0 : i32
    scf.if %2 {
      %cst_162 = arith.constant 0.000000e+00 : f32
      %288 = vector.broadcast %cst_162 : f32 to vector<1x1x1x4xf32>
      %c0_163 = arith.constant 0 : index
      %c0_164 = arith.constant 0 : index
      %c0_165 = arith.constant 0 : index
      %c0_166 = arith.constant 0 : index
      %289 = vector.load %arg8[%c0_163, %c0_164, %c0_165, %c0_166] : memref<1x1x1x4xf32, #tpu.memory_space<vmem>>, vector<1x1x1x4xf32>
      tpu.vector_store %arg8[%c0_163, %c0_164, %c0_165, %c0_166], %288 {strides = array<i32>} : memref<1x1x1x4xf32, #tpu.memory_space<vmem>>, vector<1x1x1x4xf32>,
    } else {
    }
    %c0 = arith.constant 0 : index
    %c0_1 = arith.constant 0 : index
    %c7 = arith.constant 7 : index
    %c0_2 = arith.constant 0 : index
    %3 = vector.load %arg6[%c0, %c0_1, %c7, %c0_2] : memref<1x1x9x256xf32, #tpu.memory_space<vmem>>, vector<1x1x1x256xf32>
    %4 = vector.shape_cast %3 : vector<1x1x1x256xf32> to vector<1x256xf32>
    %c0_3 = arith.constant 0 : index
    %c0_4 = arith.constant 0 : index
    %c8 = arith.constant 8 : index
    %c0_5 = arith.constant 0 : index
    %5 = vector.load %arg6[%c0_3, %c0_4, %c8, %c0_5] : memref<1x1x9x256xf32, #tpu.memory_space<vmem>>, vector<1x1x1x256xf32>
    %6 = vector.shape_cast %5 : vector<1x1x1x256xf32> to vector<1x256xf32>
    %c0_6 = arith.constant 0 : index
    %c0_7 = arith.constant 0 : index
    %c0_8 = arith.constant 0 : index
    %c0_9 = arith.constant 0 : index
    %7 = vector.load %arg3[%c0_6, %c0_7, %c0_8, %c0_9] : memref<1x1x1x256xf32, #tpu.memory_space<vmem>>, vector<1x1x1x256xf32>
    %8 = vector.shape_cast %7 : vector<1x1x1x256xf32> to vector<1x256xf32>
    %cst = arith.constant 0.000000e+00 : f32
    %9 = vector.broadcast %cst : f32 to vector<1x256xf32>
    %10 = arith.cmpf ogt, %4, %9 : vector<1x256xf32>
    %cst_10 = arith.constant 0.000000e+00 : f32
    %11 = vector.broadcast %cst_10 : f32 to vector<1x256xf32>
    %12 = arith.cmpf ogt, %6, %11 : vector<1x256xf32>
    %13 = arith.ori %10, %12 : vector<1x256xi1>
    %14 = arith.extui %13 : vector<1x256xi1> to vector<1x256xi32>
    %15 = arith.sitofp %14 : vector<1x256xi32> to vector<1x256xf32>
    %16 = arith.mulf %4, %15 : vector<1x256xf32>
    %17 = arith.extui %10 : vector<1x256xi1> to vector<1x256xi32>
    %18 = arith.sitofp %17 : vector<1x256xi32> to vector<1x256xf32>
    %19 = arith.extui %12 : vector<1x256xi1> to vector<1x256xi32>
    %20 = arith.sitofp %19 : vector<1x256xi32> to vector<1x256xf32>
    %cst_11 = arith.constant 5.000000e+01 : f32
    %21 = vector.broadcast %cst_11 : f32 to vector<1x256xf32>
    %22 = arith.mulf %18, %21 : vector<1x256xf32>
    %23 = arith.addf %22, %20 : vector<1x256xf32>
    %24 = math.absf %8 : vector<1x256xf32>
    %cst_12 = arith.constant 0.000000e+00 : f32
    %25 = vector.broadcast %cst_12 : f32 to vector<1x256xf32>
    %26 = arith.subf %25, %24 : vector<1x256xf32>
    %27 = math.exp %26 : vector<1x256xf32>
    %cst_13 = arith.constant 0.000000e+00 : f32
    %28 = vector.broadcast %cst_13 : f32 to vector<1x256xf32>
    %29 = arith.maximumf %8, %28 : vector<1x256xf32>
    %30 = arith.mulf %8, %16 : vector<1x256xf32>
    %31 = arith.subf %29, %30 : vector<1x256xf32>
    %cst_14 = arith.constant 1.000000e+00 : f32
    %32 = vector.broadcast %cst_14 : f32 to vector<1x256xf32>
    %33 = arith.addf %32, %27 : vector<1x256xf32>
    %34 = math.log %33 : vector<1x256xf32>
    %35 = arith.addf %31, %34 : vector<1x256xf32>
    %cst_15 = arith.constant 1.000000e+00 : f32
    %36 = vector.broadcast %cst_15 : f32 to vector<1x256xf32>
    %37 = arith.addf %36, %27 : vector<1x256xf32>
    %38 = tpu.reciprocal %37 {approx = true} : vector<1x256xf32> -> vector<1x256xf32>
    %cst_16 = arith.constant 0.000000e+00 : f32
    %39 = vector.broadcast %cst_16 : f32 to vector<1x256xf32>
    %40 = arith.cmpf oge, %8, %39 : vector<1x256xf32>
    %cst_17 = arith.constant 1.000000e+00 : f32
    %41 = vector.broadcast %cst_17 : f32 to vector<1x256xf32>
    %42 = arith.select %40, %41, %27 : vector<1x256xi1>, vector<1x256xf32>
    %43 = arith.mulf %42, %38 : vector<1x256xf32>
    %44 = arith.mulf %16, %43 : vector<1x256xf32>
    %cst_18 = arith.constant 1.000000e+00 : f32
    %45 = vector.broadcast %cst_18 : f32 to vector<1x256xf32>
    %46 = arith.subf %45, %16 : vector<1x256xf32>
    %cst_19 = arith.constant 1.000000e+00 : f32
    %47 = vector.broadcast %cst_19 : f32 to vector<1x256xf32>
    %48 = arith.subf %47, %43 : vector<1x256xf32>
    %49 = arith.mulf %46, %48 : vector<1x256xf32>
    %50 = arith.addf %44, %49 : vector<1x256xf32>
    %cst_20 = arith.constant 1.000000e+00 : f32
    %51 = vector.broadcast %cst_20 : f32 to vector<1x256xf32>
    %52 = arith.subf %51, %50 : vector<1x256xf32>
    %53 = arith.mulf %52, %52 : vector<1x256xf32>
    %cst_21 = arith.constant 2.500000e-01 : f32
    %54 = vector.broadcast %cst_21 : f32 to vector<1x256xf32>
    %55 = arith.mulf %16, %54 : vector<1x256xf32>
    %cst_22 = arith.constant 1.000000e+00 : f32
    %56 = vector.broadcast %cst_22 : f32 to vector<1x256xf32>
    %57 = arith.subf %56, %16 : vector<1x256xf32>
    %cst_23 = arith.constant 7.500000e-01 : f32
    %58 = vector.broadcast %cst_23 : f32 to vector<1x256xf32>
    %59 = arith.mulf %57, %58 : vector<1x256xf32>
    %60 = arith.addf %55, %59 : vector<1x256xf32>
    %61 = arith.mulf %53, %60 : vector<1x256xf32>
    %62 = arith.mulf %61, %35 : vector<1x256xf32>
    %63 = arith.mulf %62, %23 : vector<1x256xf32>
    %cst_24 = arith.constant dense<0.000000e+00> : vector<1xf32>
    %64 = vector.multi_reduction <add>, %63, %cst_24 [1] : vector<1x256xf32> to vector<1xf32>
    %65 = vector.shape_cast %64 : vector<1xf32> to vector<1x1xf32>
    %cst_25 = arith.constant dense<0.000000e+00> : vector<1xf32>
    %66 = vector.multi_reduction <add>, %18, %cst_25 [1] : vector<1x256xf32> to vector<1xf32>
    %67 = vector.shape_cast %66 : vector<1xf32> to vector<1x1xf32>
    %cst_26 = arith.constant 0.000000e+00 : f32
    %68 = vector.broadcast %cst_26 : f32 to vector<1x256xf32>
    %c0_27 = arith.constant 0 : index
    %c0_28 = arith.constant 0 : index
    %c0_29 = arith.constant 0 : index
    %c0_30 = arith.constant 0 : index
    %69 = vector.load %arg4[%c0_27, %c0_28, %c0_29, %c0_30] : memref<1x1x7x256xf32, #tpu.memory_space<vmem>>, vector<1x1x1x256xf32>
    %70 = vector.shape_cast %69 : vector<1x1x1x256xf32> to vector<1x256xf32>
    %c0_31 = arith.constant 0 : index
    %c0_32 = arith.constant 0 : index
    %c0_33 = arith.constant 0 : index
    %c0_34 = arith.constant 0 : index
    %71 = vector.load %arg6[%c0_31, %c0_32, %c0_33, %c0_34] : memref<1x1x9x256xf32, #tpu.memory_space<vmem>>, vector<1x1x1x256xf32>
    %72 = vector.shape_cast %71 : vector<1x1x1x256xf32> to vector<1x256xf32>
    %73 = arith.subf %70, %72 : vector<1x256xf32>
    %74 = math.absf %73 : vector<1x256xf32>
    %cst_35 = arith.constant 0.111111112 : f32
    %75 = vector.broadcast %cst_35 : f32 to vector<1x256xf32>
    %76 = arith.cmpf ole, %74, %75 : vector<1x256xf32>
    %77 = arith.extui %76 : vector<1x256xi1> to vector<1x256xi32>
    %78 = arith.sitofp %77 : vector<1x256xi32> to vector<1x256xf32>
    %cst_36 = arith.constant 3.000000e+00 : f32
    %79 = vector.broadcast %cst_36 : f32 to vector<1x256xf32>
    %80 = arith.mulf %74, %79 : vector<1x256xf32>
    %81 = arith.mulf %80, %80 : vector<1x256xf32>
    %cst_37 = arith.constant 5.000000e-01 : f32
    %82 = vector.broadcast %cst_37 : f32 to vector<1x256xf32>
    %83 = arith.mulf %82, %81 : vector<1x256xf32>
    %cst_38 = arith.constant 0.055555556 : f32
    %84 = vector.broadcast %cst_38 : f32 to vector<1x256xf32>
    %85 = arith.subf %74, %84 : vector<1x256xf32>
    %86 = arith.mulf %78, %83 : vector<1x256xf32>
    %cst_39 = arith.constant 1.000000e+00 : f32
    %87 = vector.broadcast %cst_39 : f32 to vector<1x256xf32>
    %88 = arith.subf %87, %78 : vector<1x256xf32>
    %89 = arith.mulf %88, %85 : vector<1x256xf32>
    %90 = arith.addf %86, %89 : vector<1x256xf32>
    %91 = arith.addf %68, %90 : vector<1x256xf32>
    %c0_40 = arith.constant 0 : index
    %c0_41 = arith.constant 0 : index
    %c1 = arith.constant 1 : index
    %c0_42 = arith.constant 0 : index
    %92 = vector.load %arg4[%c0_40, %c0_41, %c1, %c0_42] : memref<1x1x7x256xf32, #tpu.memory_space<vmem>>, vector<1x1x1x256xf32>
    %93 = vector.shape_cast %92 : vector<1x1x1x256xf32> to vector<1x256xf32>
    %c0_43 = arith.constant 0 : index
    %c0_44 = arith.constant 0 : index
    %c1_45 = arith.constant 1 : index
    %c0_46 = arith.constant 0 : index
    %94 = vector.load %arg6[%c0_43, %c0_44, %c1_45, %c0_46] : memref<1x1x9x256xf32, #tpu.memory_space<vmem>>, vector<1x1x1x256xf32>
    %95 = vector.shape_cast %94 : vector<1x1x1x256xf32> to vector<1x256xf32>
    %96 = arith.subf %93, %95 : vector<1x256xf32>
    %97 = math.absf %96 : vector<1x256xf32>
    %cst_47 = arith.constant 0.111111112 : f32
    %98 = vector.broadcast %cst_47 : f32 to vector<1x256xf32>
    %99 = arith.cmpf ole, %97, %98 : vector<1x256xf32>
    %100 = arith.extui %99 : vector<1x256xi1> to vector<1x256xi32>
    %101 = arith.sitofp %100 : vector<1x256xi32> to vector<1x256xf32>
    %cst_48 = arith.constant 3.000000e+00 : f32
    %102 = vector.broadcast %cst_48 : f32 to vector<1x256xf32>
    %103 = arith.mulf %97, %102 : vector<1x256xf32>
    %104 = arith.mulf %103, %103 : vector<1x256xf32>
    %cst_49 = arith.constant 5.000000e-01 : f32
    %105 = vector.broadcast %cst_49 : f32 to vector<1x256xf32>
    %106 = arith.mulf %105, %104 : vector<1x256xf32>
    %cst_50 = arith.constant 0.055555556 : f32
    %107 = vector.broadcast %cst_50 : f32 to vector<1x256xf32>
    %108 = arith.subf %97, %107 : vector<1x256xf32>
    %109 = arith.mulf %101, %106 : vector<1x256xf32>
    %cst_51 = arith.constant 1.000000e+00 : f32
    %110 = vector.broadcast %cst_51 : f32 to vector<1x256xf32>
    %111 = arith.subf %110, %101 : vector<1x256xf32>
    %112 = arith.mulf %111, %108 : vector<1x256xf32>
    %113 = arith.addf %109, %112 : vector<1x256xf32>
    %114 = arith.addf %91, %113 : vector<1x256xf32>
    %c0_52 = arith.constant 0 : index
    %c0_53 = arith.constant 0 : index
    %c2 = arith.constant 2 : index
    %c0_54 = arith.constant 0 : index
    %115 = vector.load %arg4[%c0_52, %c0_53, %c2, %c0_54] : memref<1x1x7x256xf32, #tpu.memory_space<vmem>>, vector<1x1x1x256xf32>
    %116 = vector.shape_cast %115 : vector<1x1x1x256xf32> to vector<1x256xf32>
    %c0_55 = arith.constant 0 : index
    %c0_56 = arith.constant 0 : index
    %c2_57 = arith.constant 2 : index
    %c0_58 = arith.constant 0 : index
    %117 = vector.load %arg6[%c0_55, %c0_56, %c2_57, %c0_58] : memref<1x1x9x256xf32, #tpu.memory_space<vmem>>, vector<1x1x1x256xf32>
    %118 = vector.shape_cast %117 : vector<1x1x1x256xf32> to vector<1x256xf32>
    %119 = arith.subf %116, %118 : vector<1x256xf32>
    %120 = math.absf %119 : vector<1x256xf32>
    %cst_59 = arith.constant 0.111111112 : f32
    %121 = vector.broadcast %cst_59 : f32 to vector<1x256xf32>
    %122 = arith.cmpf ole, %120, %121 : vector<1x256xf32>
    %123 = arith.extui %122 : vector<1x256xi1> to vector<1x256xi32>
    %124 = arith.sitofp %123 : vector<1x256xi32> to vector<1x256xf32>
    %cst_60 = arith.constant 3.000000e+00 : f32
    %125 = vector.broadcast %cst_60 : f32 to vector<1x256xf32>
    %126 = arith.mulf %120, %125 : vector<1x256xf32>
    %127 = arith.mulf %126, %126 : vector<1x256xf32>
    %cst_61 = arith.constant 5.000000e-01 : f32
    %128 = vector.broadcast %cst_61 : f32 to vector<1x256xf32>
    %129 = arith.mulf %128, %127 : vector<1x256xf32>
    %cst_62 = arith.constant 0.055555556 : f32
    %130 = vector.broadcast %cst_62 : f32 to vector<1x256xf32>
    %131 = arith.subf %120, %130 : vector<1x256xf32>
    %132 = arith.mulf %124, %129 : vector<1x256xf32>
    %cst_63 = arith.constant 1.000000e+00 : f32
    %133 = vector.broadcast %cst_63 : f32 to vector<1x256xf32>
    %134 = arith.subf %133, %124 : vector<1x256xf32>
    %135 = arith.mulf %134, %131 : vector<1x256xf32>
    %136 = arith.addf %132, %135 : vector<1x256xf32>
    %137 = arith.addf %114, %136 : vector<1x256xf32>
    %c0_64 = arith.constant 0 : index
    %c0_65 = arith.constant 0 : index
    %c3 = arith.constant 3 : index
    %c0_66 = arith.constant 0 : index
    %138 = vector.load %arg4[%c0_64, %c0_65, %c3, %c0_66] : memref<1x1x7x256xf32, #tpu.memory_space<vmem>>, vector<1x1x1x256xf32>
    %139 = vector.shape_cast %138 : vector<1x1x1x256xf32> to vector<1x256xf32>
    %c0_67 = arith.constant 0 : index
    %c0_68 = arith.constant 0 : index
    %c3_69 = arith.constant 3 : index
    %c0_70 = arith.constant 0 : index
    %140 = vector.load %arg6[%c0_67, %c0_68, %c3_69, %c0_70] : memref<1x1x9x256xf32, #tpu.memory_space<vmem>>, vector<1x1x1x256xf32>
    %141 = vector.shape_cast %140 : vector<1x1x1x256xf32> to vector<1x256xf32>
    %142 = arith.subf %139, %141 : vector<1x256xf32>
    %143 = math.absf %142 : vector<1x256xf32>
    %cst_71 = arith.constant 0.111111112 : f32
    %144 = vector.broadcast %cst_71 : f32 to vector<1x256xf32>
    %145 = arith.cmpf ole, %143, %144 : vector<1x256xf32>
    %146 = arith.extui %145 : vector<1x256xi1> to vector<1x256xi32>
    %147 = arith.sitofp %146 : vector<1x256xi32> to vector<1x256xf32>
    %cst_72 = arith.constant 3.000000e+00 : f32
    %148 = vector.broadcast %cst_72 : f32 to vector<1x256xf32>
    %149 = arith.mulf %143, %148 : vector<1x256xf32>
    %150 = arith.mulf %149, %149 : vector<1x256xf32>
    %cst_73 = arith.constant 5.000000e-01 : f32
    %151 = vector.broadcast %cst_73 : f32 to vector<1x256xf32>
    %152 = arith.mulf %151, %150 : vector<1x256xf32>
    %cst_74 = arith.constant 0.055555556 : f32
    %153 = vector.broadcast %cst_74 : f32 to vector<1x256xf32>
    %154 = arith.subf %143, %153 : vector<1x256xf32>
    %155 = arith.mulf %147, %152 : vector<1x256xf32>
    %cst_75 = arith.constant 1.000000e+00 : f32
    %156 = vector.broadcast %cst_75 : f32 to vector<1x256xf32>
    %157 = arith.subf %156, %147 : vector<1x256xf32>
    %158 = arith.mulf %157, %154 : vector<1x256xf32>
    %159 = arith.addf %155, %158 : vector<1x256xf32>
    %160 = arith.addf %137, %159 : vector<1x256xf32>
    %c0_76 = arith.constant 0 : index
    %c0_77 = arith.constant 0 : index
    %c4 = arith.constant 4 : index
    %c0_78 = arith.constant 0 : index
    %161 = vector.load %arg4[%c0_76, %c0_77, %c4, %c0_78] : memref<1x1x7x256xf32, #tpu.memory_space<vmem>>, vector<1x1x1x256xf32>
    %162 = vector.shape_cast %161 : vector<1x1x1x256xf32> to vector<1x256xf32>
    %c0_79 = arith.constant 0 : index
    %c0_80 = arith.constant 0 : index
    %c4_81 = arith.constant 4 : index
    %c0_82 = arith.constant 0 : index
    %163 = vector.load %arg6[%c0_79, %c0_80, %c4_81, %c0_82] : memref<1x1x9x256xf32, #tpu.memory_space<vmem>>, vector<1x1x1x256xf32>
    %164 = vector.shape_cast %163 : vector<1x1x1x256xf32> to vector<1x256xf32>
    %165 = arith.subf %162, %164 : vector<1x256xf32>
    %166 = math.absf %165 : vector<1x256xf32>
    %cst_83 = arith.constant 0.111111112 : f32
    %167 = vector.broadcast %cst_83 : f32 to vector<1x256xf32>
    %168 = arith.cmpf ole, %166, %167 : vector<1x256xf32>
    %169 = arith.extui %168 : vector<1x256xi1> to vector<1x256xi32>
    %170 = arith.sitofp %169 : vector<1x256xi32> to vector<1x256xf32>
    %cst_84 = arith.constant 3.000000e+00 : f32
    %171 = vector.broadcast %cst_84 : f32 to vector<1x256xf32>
    %172 = arith.mulf %166, %171 : vector<1x256xf32>
    %173 = arith.mulf %172, %172 : vector<1x256xf32>
    %cst_85 = arith.constant 5.000000e-01 : f32
    %174 = vector.broadcast %cst_85 : f32 to vector<1x256xf32>
    %175 = arith.mulf %174, %173 : vector<1x256xf32>
    %cst_86 = arith.constant 0.055555556 : f32
    %176 = vector.broadcast %cst_86 : f32 to vector<1x256xf32>
    %177 = arith.subf %166, %176 : vector<1x256xf32>
    %178 = arith.mulf %170, %175 : vector<1x256xf32>
    %cst_87 = arith.constant 1.000000e+00 : f32
    %179 = vector.broadcast %cst_87 : f32 to vector<1x256xf32>
    %180 = arith.subf %179, %170 : vector<1x256xf32>
    %181 = arith.mulf %180, %177 : vector<1x256xf32>
    %182 = arith.addf %178, %181 : vector<1x256xf32>
    %183 = arith.addf %160, %182 : vector<1x256xf32>
    %c0_88 = arith.constant 0 : index
    %c0_89 = arith.constant 0 : index
    %c5 = arith.constant 5 : index
    %c0_90 = arith.constant 0 : index
    %184 = vector.load %arg4[%c0_88, %c0_89, %c5, %c0_90] : memref<1x1x7x256xf32, #tpu.memory_space<vmem>>, vector<1x1x1x256xf32>
    %185 = vector.shape_cast %184 : vector<1x1x1x256xf32> to vector<1x256xf32>
    %c0_91 = arith.constant 0 : index
    %c0_92 = arith.constant 0 : index
    %c5_93 = arith.constant 5 : index
    %c0_94 = arith.constant 0 : index
    %186 = vector.load %arg6[%c0_91, %c0_92, %c5_93, %c0_94] : memref<1x1x9x256xf32, #tpu.memory_space<vmem>>, vector<1x1x1x256xf32>
    %187 = vector.shape_cast %186 : vector<1x1x1x256xf32> to vector<1x256xf32>
    %188 = arith.subf %185, %187 : vector<1x256xf32>
    %189 = math.absf %188 : vector<1x256xf32>
    %cst_95 = arith.constant 0.111111112 : f32
    %190 = vector.broadcast %cst_95 : f32 to vector<1x256xf32>
    %191 = arith.cmpf ole, %189, %190 : vector<1x256xf32>
    %192 = arith.extui %191 : vector<1x256xi1> to vector<1x256xi32>
    %193 = arith.sitofp %192 : vector<1x256xi32> to vector<1x256xf32>
    %cst_96 = arith.constant 3.000000e+00 : f32
    %194 = vector.broadcast %cst_96 : f32 to vector<1x256xf32>
    %195 = arith.mulf %189, %194 : vector<1x256xf32>
    %196 = arith.mulf %195, %195 : vector<1x256xf32>
    %cst_97 = arith.constant 5.000000e-01 : f32
    %197 = vector.broadcast %cst_97 : f32 to vector<1x256xf32>
    %198 = arith.mulf %197, %196 : vector<1x256xf32>
    %cst_98 = arith.constant 0.055555556 : f32
    %199 = vector.broadcast %cst_98 : f32 to vector<1x256xf32>
    %200 = arith.subf %189, %199 : vector<1x256xf32>
    %201 = arith.mulf %193, %198 : vector<1x256xf32>
    %cst_99 = arith.constant 1.000000e+00 : f32
    %202 = vector.broadcast %cst_99 : f32 to vector<1x256xf32>
    %203 = arith.subf %202, %193 : vector<1x256xf32>
    %204 = arith.mulf %203, %200 : vector<1x256xf32>
    %205 = arith.addf %201, %204 : vector<1x256xf32>
    %206 = arith.addf %183, %205 : vector<1x256xf32>
    %c0_100 = arith.constant 0 : index
    %c0_101 = arith.constant 0 : index
    %c6 = arith.constant 6 : index
    %c0_102 = arith.constant 0 : index
    %207 = vector.load %arg4[%c0_100, %c0_101, %c6, %c0_102] : memref<1x1x7x256xf32, #tpu.memory_space<vmem>>, vector<1x1x1x256xf32>
    %208 = vector.shape_cast %207 : vector<1x1x1x256xf32> to vector<1x256xf32>
    %c0_103 = arith.constant 0 : index
    %c0_104 = arith.constant 0 : index
    %c6_105 = arith.constant 6 : index
    %c0_106 = arith.constant 0 : index
    %209 = vector.load %arg6[%c0_103, %c0_104, %c6_105, %c0_106] : memref<1x1x9x256xf32, #tpu.memory_space<vmem>>, vector<1x1x1x256xf32>
    %210 = vector.shape_cast %209 : vector<1x1x1x256xf32> to vector<1x256xf32>
    %211 = math.cos %208 : vector<1x256xf32>
    %212 = math.sin %210 : vector<1x256xf32>
    %213 = arith.mulf %211, %212 : vector<1x256xf32>
    %214 = arith.subf %208, %210 : vector<1x256xf32>
    %215 = math.sin %214 : vector<1x256xf32>
    %216 = math.absf %215 : vector<1x256xf32>
    %cst_107 = arith.constant 0.111111112 : f32
    %217 = vector.broadcast %cst_107 : f32 to vector<1x256xf32>
    %218 = arith.cmpf ole, %216, %217 : vector<1x256xf32>
    %219 = arith.extui %218 : vector<1x256xi1> to vector<1x256xi32>
    %220 = arith.sitofp %219 : vector<1x256xi32> to vector<1x256xf32>
    %cst_108 = arith.constant 3.000000e+00 : f32
    %221 = vector.broadcast %cst_108 : f32 to vector<1x256xf32>
    %222 = arith.mulf %216, %221 : vector<1x256xf32>
    %223 = arith.mulf %222, %222 : vector<1x256xf32>
    %cst_109 = arith.constant 5.000000e-01 : f32
    %224 = vector.broadcast %cst_109 : f32 to vector<1x256xf32>
    %225 = arith.mulf %224, %223 : vector<1x256xf32>
    %cst_110 = arith.constant 0.055555556 : f32
    %226 = vector.broadcast %cst_110 : f32 to vector<1x256xf32>
    %227 = arith.subf %216, %226 : vector<1x256xf32>
    %228 = arith.mulf %220, %225 : vector<1x256xf32>
    %cst_111 = arith.constant 1.000000e+00 : f32
    %229 = vector.broadcast %cst_111 : f32 to vector<1x256xf32>
    %230 = arith.subf %229, %220 : vector<1x256xf32>
    %231 = arith.mulf %230, %227 : vector<1x256xf32>
    %232 = arith.addf %228, %231 : vector<1x256xf32>
    %233 = arith.addf %206, %232 : vector<1x256xf32>
    %234 = arith.mulf %233, %18 : vector<1x256xf32>
    %cst_112 = arith.constant dense<0.000000e+00> : vector<1xf32>
    %235 = vector.multi_reduction <add>, %234, %cst_112 [1] : vector<1x256xf32> to vector<1xf32>
    %236 = vector.shape_cast %235 : vector<1xf32> to vector<1x1xf32>
    %c0_113 = arith.constant 0 : index
    %c0_114 = arith.constant 0 : index
    %c0_115 = arith.constant 0 : index
    %237 = vector.load %arg7[%c0_113, %c0_114, %c0_115] : memref<1x1x256xf32, #tpu.memory_space<vmem>>, vector<1x1x256xf32>
    %238 = vector.shape_cast %237 : vector<1x1x256xf32> to vector<1x256xf32>
    %239 = arith.addf %213, %238 : vector<1x256xf32>
    %cst_116 = arith.constant 0.000000e+00 : f32
    %240 = vector.broadcast %cst_116 : f32 to vector<1x256xf32>
    %241 = arith.subf %239, %240 : vector<1x256xf32>
    %cst_117 = arith.constant 0.000000e+00 : f32
    %242 = vector.broadcast %cst_117 : f32 to vector<1x256xf32>
    %243 = arith.cmpf ogt, %241, %242 : vector<1x256xf32>
    %c0_118 = arith.constant 0 : index
    %c0_119 = arith.constant 0 : index
    %c0_120 = arith.constant 0 : index
    %c0_121 = arith.constant 0 : index
    %244 = vector.load %arg5[%c0_118, %c0_119, %c0_120, %c0_121] : memref<1x1x2x256xf32, #tpu.memory_space<vmem>>, vector<1x1x1x256xf32>
    %245 = vector.shape_cast %244 : vector<1x1x1x256xf32> to vector<1x256xf32>
    %c0_122 = arith.constant 0 : index
    %c0_123 = arith.constant 0 : index
    %c1_124 = arith.constant 1 : index
    %c0_125 = arith.constant 0 : index
    %246 = vector.load %arg5[%c0_122, %c0_123, %c1_124, %c0_125] : memref<1x1x2x256xf32, #tpu.memory_space<vmem>>, vector<1x1x1x256xf32>
    %247 = vector.shape_cast %246 : vector<1x1x1x256xf32> to vector<1x256xf32>
    %248 = arith.subf %245, %247 : vector<1x256xf32>
    %249 = arith.subf %247, %245 : vector<1x256xf32>
    %250 = arith.select %243, %248, %249 : vector<1x256xi1>, vector<1x256xf32>
    %cst_126 = arith.constant 0.000000e+00 : f32
    %251 = vector.broadcast %cst_126 : f32 to vector<1x256xf32>
    %252 = arith.maximumf %250, %251 : vector<1x256xf32>
    %253 = math.absf %250 : vector<1x256xf32>
    %cst_127 = arith.constant 0.000000e+00 : f32
    %254 = vector.broadcast %cst_127 : f32 to vector<1x256xf32>
    %255 = arith.subf %254, %253 : vector<1x256xf32>
    %256 = math.exp %255 : vector<1x256xf32>
    %cst_128 = arith.constant 1.000000e+00 : f32
    %257 = vector.broadcast %cst_128 : f32 to vector<1x256xf32>
    %258 = arith.addf %257, %256 : vector<1x256xf32>
    %259 = math.log %258 : vector<1x256xf32>
    %260 = arith.addf %252, %259 : vector<1x256xf32>
    %261 = arith.mulf %260, %18 : vector<1x256xf32>
    %cst_129 = arith.constant dense<0.000000e+00> : vector<1xf32>
    %262 = vector.multi_reduction <add>, %261, %cst_129 [1] : vector<1x256xf32> to vector<1xf32>
    %263 = vector.shape_cast %262 : vector<1xf32> to vector<1x1xf32>
    %c0_130 = arith.constant 0 : index
    %c0_131 = arith.constant 0 : index
    %c0_132 = arith.constant 0 : index
    %c0_133 = arith.constant 0 : index
    %264 = vector.load %arg8[%c0_130, %c0_131, %c0_132, %c0_133] : memref<1x1x1x4xf32, #tpu.memory_space<vmem>>, vector<1x1x1x1xf32>
    %265 = vector.shape_cast %264 : vector<1x1x1x1xf32> to vector<1x1xf32>
    %266 = arith.addf %265, %65 : vector<1x1xf32>
    %c0_134 = arith.constant 0 : index
    %c0_135 = arith.constant 0 : index
    %c0_136 = arith.constant 0 : index
    %c0_137 = arith.constant 0 : index
    %267 = vector.load %arg8[%c0_134, %c0_135, %c0_136, %c0_137] : memref<1x1x1x4xf32, #tpu.memory_space<vmem>>, vector<1x1x1x1xf32>
    %268 = vector.shape_cast %267 : vector<1x1x1x1xf32> to vector<1x1xf32>
    %269 = vector.shape_cast %266 : vector<1x1xf32> to vector<1x1x1x1xf32>
    tpu.vector_store %arg8[%c0_134, %c0_135, %c0_136, %c0_137], %269 {strides = array<i32>} : memref<1x1x1x4xf32, #tpu.memory_space<vmem>>, vector<1x1x1x1xf32>,
    %c0_138 = arith.constant 0 : index
    %c0_139 = arith.constant 0 : index
    %c0_140 = arith.constant 0 : index
    %c1_141 = arith.constant 1 : index
    %270 = vector.load %arg8[%c0_138, %c0_139, %c0_140, %c1_141] : memref<1x1x1x4xf32, #tpu.memory_space<vmem>>, vector<1x1x1x1xf32>
    %271 = vector.shape_cast %270 : vector<1x1x1x1xf32> to vector<1x1xf32>
    %272 = arith.addf %271, %236 : vector<1x1xf32>
    %c0_142 = arith.constant 0 : index
    %c0_143 = arith.constant 0 : index
    %c0_144 = arith.constant 0 : index
    %c1_145 = arith.constant 1 : index
    %273 = vector.load %arg8[%c0_142, %c0_143, %c0_144, %c1_145] : memref<1x1x1x4xf32, #tpu.memory_space<vmem>>, vector<1x1x1x1xf32>
    %274 = vector.shape_cast %273 : vector<1x1x1x1xf32> to vector<1x1xf32>
    %275 = vector.shape_cast %272 : vector<1x1xf32> to vector<1x1x1x1xf32>
    tpu.vector_store %arg8[%c0_142, %c0_143, %c0_144, %c1_145], %275 {strides = array<i32>} : memref<1x1x1x4xf32, #tpu.memory_space<vmem>>, vector<1x1x1x1xf32>,
    %c0_146 = arith.constant 0 : index
    %c0_147 = arith.constant 0 : index
    %c0_148 = arith.constant 0 : index
    %c2_149 = arith.constant 2 : index
    %276 = vector.load %arg8[%c0_146, %c0_147, %c0_148, %c2_149] : memref<1x1x1x4xf32, #tpu.memory_space<vmem>>, vector<1x1x1x1xf32>
    %277 = vector.shape_cast %276 : vector<1x1x1x1xf32> to vector<1x1xf32>
    %278 = arith.addf %277, %263 : vector<1x1xf32>
    %c0_150 = arith.constant 0 : index
    %c0_151 = arith.constant 0 : index
    %c0_152 = arith.constant 0 : index
    %c2_153 = arith.constant 2 : index
    %279 = vector.load %arg8[%c0_150, %c0_151, %c0_152, %c2_153] : memref<1x1x1x4xf32, #tpu.memory_space<vmem>>, vector<1x1x1x1xf32>
    %280 = vector.shape_cast %279 : vector<1x1x1x1xf32> to vector<1x1xf32>
    %281 = vector.shape_cast %278 : vector<1x1xf32> to vector<1x1x1x1xf32>
    tpu.vector_store %arg8[%c0_150, %c0_151, %c0_152, %c2_153], %281 {strides = array<i32>} : memref<1x1x1x4xf32, #tpu.memory_space<vmem>>, vector<1x1x1x1xf32>,
    %c0_154 = arith.constant 0 : index
    %c0_155 = arith.constant 0 : index
    %c0_156 = arith.constant 0 : index
    %c3_157 = arith.constant 3 : index
    %282 = vector.load %arg8[%c0_154, %c0_155, %c0_156, %c3_157] : memref<1x1x1x4xf32, #tpu.memory_space<vmem>>, vector<1x1x1x1xf32>
    %283 = vector.shape_cast %282 : vector<1x1x1x1xf32> to vector<1x1xf32>
    %284 = arith.addf %283, %67 : vector<1x1xf32>
    %c0_158 = arith.constant 0 : index
    %c0_159 = arith.constant 0 : index
    %c0_160 = arith.constant 0 : index
    %c3_161 = arith.constant 3 : index
    %285 = vector.load %arg8[%c0_158, %c0_159, %c0_160, %c3_161] : memref<1x1x1x4xf32, #tpu.memory_space<vmem>>, vector<1x1x1x1xf32>
    %286 = vector.shape_cast %285 : vector<1x1x1x1xf32> to vector<1x1xf32>
    %287 = vector.shape_cast %284 : vector<1x1xf32> to vector<1x1x1x1xf32>
    tpu.vector_store %arg8[%c0_158, %c0_159, %c0_160, %c3_161], %287 {strides = array<i32>} : memref<1x1x1x4xf32, #tpu.memory_space<vmem>>, vector<1x1x1x1xf32>,
    return
  }
  func.func @transform_0(%arg0: i32, %arg1: i32, %arg2: i32) -> (i32, i32, i32, i32) {
    %c0_i32 = arith.constant 0 : i32
    %c0_i32_0 = arith.constant 0 : i32
    return %arg0, %arg1, %c0_i32, %arg2 : i32, i32, i32, i32
  }
  func.func @transform_1(%arg0: i32, %arg1: i32, %arg2: i32) -> (i32, i32, i32, i32) {
    %c0_i32 = arith.constant 0 : i32
    %c0_i32_0 = arith.constant 0 : i32
    return %arg0, %arg1, %c0_i32, %arg2 : i32, i32, i32, i32
  }
  func.func @transform_2(%arg0: i32, %arg1: i32, %arg2: i32) -> (i32, i32, i32, i32) {
    %c0_i32 = arith.constant 0 : i32
    %c0_i32_0 = arith.constant 0 : i32
    return %arg0, %arg1, %c0_i32, %arg2 : i32, i32, i32, i32
  }
  func.func @transform_3(%arg0: i32, %arg1: i32, %arg2: i32) -> (i32, i32, i32, i32) {
    %c0_i32 = arith.constant 0 : i32
    %c0_i32_0 = arith.constant 0 : i32
    return %arg0, %arg1, %c0_i32, %arg2 : i32, i32, i32, i32
  }
  func.func @transform_4(%arg0: i32, %arg1: i32, %arg2: i32) -> (i32, i32, i32) {
    %c0_i32 = arith.constant 0 : i32
    %c0_i32_0 = arith.constant 0 : i32
    return %arg1, %c0_i32, %arg2 : i32, i32, i32
  }
  func.func @transform_5(%arg0: i32, %arg1: i32, %arg2: i32) -> (i32, i32, i32, i32) {
    %c0_i32 = arith.constant 0 : i32
    %c0_i32_0 = arith.constant 0 : i32
    %c0_i32_1 = arith.constant 0 : i32
    return %arg0, %arg1, %c0_i32, %c0_i32_0 : i32, i32, i32, i32
  }
}

</mosaic_0001>

<llo_original>
// kernel: tpu_custom_call.1
$region0: #{tpu_custom_call.1}
  #allocation0 [shape = 'u32[]', space=smem, size = 0x4, offset = 0x4, fixed_abs, tag = 'smem constant byte address 0x4 - core index']
  #allocation1 [shape = 'u32[144,128]{1,0:T(1,128)}', space=vmem, size = 0x12000, scoped, tag = 'internal scratch']
  %s0 = inlined_call_operand.vmem [shape: f32[2,2,1,256], index: 0, kind: input, shape index: {}]
  %s1 = inlined_call_operand.vmem [shape: f32[2,2,7,256], index: 1, kind: input, shape index: {}]
  %s2 = inlined_call_operand.vmem [shape: f32[2,2,2,256], index: 2, kind: input, shape index: {}]
  %s3 = inlined_call_operand.vmem [shape: f32[2,2,9,256], index: 3, kind: input, shape index: {}]
  %s4 = inlined_call_operand.vmem [shape: f32[2,1,256], index: 4, kind: input, shape index: {}]
  %s5 = inlined_call_operand.hbm [shape: f32[2,2,1,4], index: 5, kind: output, shape index: {}]
  %s6 = sld [smem:[#allocation0]]
  $region57: #{tpu_custom_call.1} parent=0
    _
  %s8 = ssub.s32 1, %s6
  %s9 = scalar_select 0, %s8, %s6
  $region1: #{tpu_custom_call.1} parent=0
    #allocation2 [shape = 'u8[1024]{0}', space=vmem, size = 0x400, scoped, tag = 'output window, operand 0']
    #allocation3 [shape = 's32[2]{0}', space=sflag, size = 0x8, scoped, tag = 'scoped memory for tpu_custom_call.1']
    %10 = vsyncpa [#allocation3], 0
    %s11 = scalar_lea.sflag [#allocation3], 1
    %12 = vsyncpa %s11, 0
    loop: start=0, step=1, limit=6
    $region2: #{tpu_custom_call.1} parent=1 // loop_pre_header
      _
    $region3: #{tpu_custom_call.1} parent=1 // loop_header
      %s14 = sphi 0, %s18
      %p15 = scmp.ge.s32.totalorder %s14, 6
      %s21 = sphi 0, %s40
      %s22 = sphi 0, %s36
      %s23 = sphi 0, %s32
      %s24 = sphi 0, %s21
      %s25 = sphi 0, %s22
      %s26 = sphi 0, %s23
      %s27 = sphi 0, %s24
      %s28 = sphi 0, %s25
      %s29 = sphi 0, %s26
      %s47 = sphi 0, %s49
      %s50 = sphi 0, %s47
      %s51 = sphi 0, %s50
      %s67 = sphi 0, %s51
      %s77 = sphi 0, %s79
      %s80 = sphi 0, %s77
      %s81 = sphi 0, %s80
      %s97 = sphi 0, %s81
      %s107 = sphi 0, %s109
      %s110 = sphi 0, %s107
      %s111 = sphi 0, %s110
      %s127 = sphi 0, %s111
      %s137 = sphi 0, %s139
      %s140 = sphi 0, %s137
      %s141 = sphi 0, %s140
      %s157 = sphi 0, %s141
      %s165 = sphi 0, %s167
      %s168 = sphi 0, %s165
      %s169 = sphi 0, %s168
      %s185 = sphi 0, %s169
      %s193 = sphi 0, %s195
      %s196 = sphi 0, %s193
      %s197 = sphi 0, %s196
      %s213 = sphi 0, %s197
    $region4: #{tpu_custom_call.1} parent=1 // loop_header_branch
      %17 = sbr.rel (%p15) target = $region8
    $region5: #{tpu_custom_call.1} parent=1 // loop_body
      %s19 = ssub.s32 %s14, 1
      %s20 = ssub.s32 %s14, 2
      %s30 = sadd.s32 1, %s23
      %p31 = scmp.ge.s32.totalorder %s30, 1
      %s32 = scalar_select %p31, 0, %s30
      %s33 = sadd.s32 1, %s22
      %s34 = scalar_select %p31, %s33, %s22
      %p35 = scmp.ge.s32.totalorder %s34, 2
      %s36 = scalar_select %p35, 0, %s34
      %s37 = sadd.s32 1, %s21
      %s38 = scalar_select %p35, %s37, %s21
      %p39 = scmp.ge.s32.totalorder %s38, 2
      %s40 = scalar_select %p39, 0, %s38
      %s41 = ssub.s32 %s21, %s40
      %s42 = ssub.s32 %s22, %s36
      %s43 = sor.u32 %s41, %s42
      %s44 = ssub.s32 %s23, %s32
      %s45 = sor.u32 %s43, %s44
      %p46 = scmp.eq.s32.totalorder %s45, 0
      %s48 = sadd.s32 %s47, 1
      %s49 = scalar_select %p46, %s47, %s48
      %p52 = pneg %p46
      %p53 = scmp.eq.s32.totalorder %s14, 3
      %p54 = por %p52, %p53
      %p55 = scmp.ne.s32.totalorder %s47, %s50
      %p56 = scmp.eq.s32.totalorder %s14, 0
      %p57 = por %p55, %p56
      %p58 = scmp.ne.s32.totalorder %s47, %s50
      %p59 = scmp.eq.s32.totalorder %s19, 3
      %p60 = por %p58, %p59
      %p61 = scmp.ne.s32.totalorder %s50, %s51
      %p62 = scmp.eq.s32.totalorder %s19, 0
      %p63 = por %p61, %p62
      %p64 = scmp.ne.s32.totalorder %s50, %s51
      %p65 = scmp.eq.s32.totalorder %s20, 3
      %p66 = por %p64, %p65
      %p68 = scmp.ne.s32.totalorder %s51, %s67
      %p69 = scmp.eq.s32.totalorder %s20, 0
      %p70 = por %p68, %p69
      %s71 = ssub.s32 %s21, %s40
      %s72 = ssub.s32 %s22, %s36
      %s73 = sor.u32 %s71, %s72
      %s74 = ssub.s32 %s23, %s32
      %s75 = sor.u32 %s73, %s74
      %p76 = scmp.eq.s32.totalorder %s75, 0
      %s78 = sadd.s32 %s77, 1
      %s79 = scalar_select %p76, %s77, %s78
      %p82 = pneg %p76
      %p83 = scmp.eq.s32.totalorder %s14, 3
      %p84 = por %p82, %p83
      %p85 = scmp.ne.s32.totalorder %s77, %s80
      %p86 = scmp.eq.s32.totalorder %s14, 0
      %p87 = por %p85, %p86
      %p88 = scmp.ne.s32.totalorder %s77, %s80
      %p89 = scmp.eq.s32.totalorder %s19, 3
      %p90 = por %p88, %p89
      %p91 = scmp.ne.s32.totalorder %s80, %s81
      %p92 = scmp.eq.s32.totalorder %s19, 0
      %p93 = por %p91, %p92
      %p94 = scmp.ne.s32.totalorder %s80, %s81
      %p95 = scmp.eq.s32.totalorder %s20, 3
      %p96 = por %p94, %p95
      %p98 = scmp.ne.s32.totalorder %s81, %s97
      %p99 = scmp.eq.s32.totalorder %s20, 0
      %p100 = por %p98, %p99
      %s101 = ssub.s32 %s21, %s40
      %s102 = ssub.s32 %s22, %s36
      %s103 = sor.u32 %s101, %s102
      %s104 = ssub.s32 %s23, %s32
      %s105 = sor.u32 %s103, %s104
      %p106 = scmp.eq.s32.totalorder %s105, 0
      %s108 = sadd.s32 %s107, 1
      %s109 = scalar_select %p106, %s107, %s108
      %p112 = pneg %p106
      %p113 = scmp.eq.s32.totalorder %s14, 3
      %p114 = por %p112, %p113
      %p115 = scmp.ne.s32.totalorder %s107, %s110
      %p116 = scmp.eq.s32.totalorder %s14, 0
      %p117 = por %p115, %p116
      %p118 = scmp.ne.s32.totalorder %s107, %s110
      %p119 = scmp.eq.s32.totalorder %s19, 3
      %p120 = por %p118, %p119
      %p121 = scmp.ne.s32.totalorder %s110, %s111
      %p122 = scmp.eq.s32.totalorder %s19, 0
      %p123 = por %p121, %p122
      %p124 = scmp.ne.s32.totalorder %s110, %s111
      %p125 = scmp.eq.s32.totalorder %s20, 3
      %p126 = por %p124, %p125
      %p128 = scmp.ne.s32.totalorder %s111, %s127
      %p129 = scmp.eq.s32.totalorder %s20, 0
      %p130 = por %p128, %p129
      %s131 = ssub.s32 %s21, %s40
      %s132 = ssub.s32 %s22, %s36
      %s133 = sor.u32 %s131, %s132
      %s134 = ssub.s32 %s23, %s32
      %s135 = sor.u32 %s133, %s134
      %p136 = scmp.eq.s32.totalorder %s135, 0
      %s138 = sadd.s32 %s137, 1
      %s139 = scalar_select %p136, %s137, %s138
      %p142 = pneg %p136
      %p143 = scmp.eq.s32.totalorder %s14, 3
      %p144 = por %p142, %p143
      %p145 = scmp.ne.s32.totalorder %s137, %s140
      %p146 = scmp.eq.s32.totalorder %s14, 0
      %p147 = por %p145, %p146
      %p148 = scmp.ne.s32.totalorder %s137, %s140
      %p149 = scmp.eq.s32.totalorder %s19, 3
      %p150 = por %p148, %p149
      %p151 = scmp.ne.s32.totalorder %s140, %s141
      %p152 = scmp.eq.s32.totalorder %s19, 0
      %p153 = por %p151, %p152
      %p154 = scmp.ne.s32.totalorder %s140, %s141
      %p155 = scmp.eq.s32.totalorder %s20, 3
      %p156 = por %p154, %p155
      %p158 = scmp.ne.s32.totalorder %s141, %s157
      %p159 = scmp.eq.s32.totalorder %s20, 0
      %p160 = por %p158, %p159
      %s161 = ssub.s32 %s22, %s36
      %s162 = ssub.s32 %s23, %s32
      %s163 = sor.u32 %s161, %s162
      %p164 = scmp.eq.s32.totalorder %s163, 0
      %s166 = sadd.s32 %s165, 1
      %s167 = scalar_select %p164, %s165, %s166
      %p170 = pneg %p164
      %p171 = scmp.eq.s32.totalorder %s14, 3
      %p172 = por %p170, %p171
      %p173 = scmp.ne.s32.totalorder %s165, %s168
      %p174 = scmp.eq.s32.totalorder %s14, 0
      %p175 = por %p173, %p174
      %p176 = scmp.ne.s32.totalorder %s165, %s168
      %p177 = scmp.eq.s32.totalorder %s19, 3
      %p178 = por %p176, %p177
      %p179 = scmp.ne.s32.totalorder %s168, %s169
      %p180 = scmp.eq.s32.totalorder %s19, 0
      %p181 = por %p179, %p180
      %p182 = scmp.ne.s32.totalorder %s168, %s169
      %p183 = scmp.eq.s32.totalorder %s20, 3
      %p184 = por %p182, %p183
      %p186 = scmp.ne.s32.totalorder %s169, %s185
      %p187 = scmp.eq.s32.totalorder %s20, 0
      %p188 = por %p186, %p187
      %s189 = ssub.s32 %s21, %s40
      %s190 = ssub.s32 %s22, %s36
      %s191 = sor.u32 %s189, %s190
      %p192 = scmp.eq.s32.totalorder %s191, 0
      %s194 = sadd.s32 %s193, 1
      %s195 = scalar_select %p192, %s193, %s194
      %p198 = pneg %p192
      %p199 = scmp.eq.s32.totalorder %s14, 3
      %p200 = por %p198, %p199
      %p201 = scmp.ne.s32.totalorder %s193, %s196
      %p202 = scmp.eq.s32.totalorder %s14, 0
      %p203 = por %p201, %p202
      %p204 = scmp.ne.s32.totalorder %s193, %s196
      %p205 = scmp.eq.s32.totalorder %s19, 3
      %p206 = por %p204, %p205
      %p207 = scmp.ne.s32.totalorder %s196, %s197
      %p208 = scmp.eq.s32.totalorder %s19, 0
      %p209 = por %p207, %p208
      %p210 = scmp.ne.s32.totalorder %s196, %s197
      %p211 = scmp.eq.s32.totalorder %s20, 3
      %p212 = por %p210, %p211
      %p214 = scmp.ne.s32.totalorder %s197, %s213
      %p215 = scmp.eq.s32.totalorder %s20, 0
      %p216 = por %p214, %p215
      %p217 = scmp.le.s32.totalorder 1, %s14
      %p218 = scmp.lt.s32.totalorder %s14, 5
      %p219 = pnand %p217, %p218
      %p220 = pneg %p219
      // Predicated region
      $region9: #{tpu_custom_call.1} parent=5 // pred_check
        _
      $region10: #{tpu_custom_call.1} parent=5 // pred_check_branch
        %222 = sbr.rel (%p219) target = $region12
      $region11: #{tpu_custom_call.1} parent=5 // pred_region
        %s223 = ssub.s32 %s14, 1
      $region12: #{tpu_custom_call.1} parent=5 // pred_fallthru
        _
      %p224 = scmp.lt.s32.totalorder %s14, 4
      // Predicated region
      $region13: #{tpu_custom_call.1} parent=5 // pred_check
        %p225 = pneg %p224
      $region14: #{tpu_custom_call.1} parent=5 // pred_check_branch
        %227 = sbr.rel (%p225) target = $region16
      $region15: #{tpu_custom_call.1} parent=5 // pred_region
        // Predicated region
        $region17: #{tpu_custom_call.1} parent=15 // pred_check
          %p228 = pneg %p57
        $region18: #{tpu_custom_call.1} parent=15 // pred_check_branch
          %230 = sbr.rel (%p228) target = $region20
        $region19: #{tpu_custom_call.1} parent=15 // pred_region
          %s231 = smul.u32 2, %s23
          %p232 = scmp.lt.s32.totalorder %s21, 1
          %s233 = scalar_select %p232, %s21, 1
          %p234 = scmp.lt.s32.totalorder %s22, 1
          %s235 = scalar_select %p234, %s22, 1
          %p236 = scmp.lt.s32.totalorder %s231, 1
          %s237 = scalar_select %p236, %s231, 1
          %s238 = smul.addr %s235, 2
          %s239 = sadd.s32 %s237, %s238
          %s240 = smul.addr %s233, 4
          %s241 = sadd.s32 %s239, %s240
          %s242 = scalar_lea.vmem %s0, %s241
          %s243 = smul.u32 2, %s23
        $region20: #{tpu_custom_call.1} parent=15 // pred_fallthru
          _
        // Predicated region
        $region21: #{tpu_custom_call.1} parent=15 // pred_check
          %p244 = pneg %p87
        $region22: #{tpu_custom_call.1} parent=15 // pred_check_branch
          %246 = sbr.rel (%p244) target = $region24
        $region23: #{tpu_custom_call.1} parent=15 // pred_region
          %s247 = smul.u32 2, %s23
          %p248 = scmp.lt.s32.totalorder %s21, 1
          %s249 = scalar_select %p248, %s21, 1
          %p250 = scmp.lt.s32.totalorder %s22, 1
          %s251 = scalar_select %p250, %s22, 1
          %p252 = scmp.lt.s32.totalorder %s247, 1
          %s253 = scalar_select %p252, %s247, 1
          %s254 = smul.addr %s251, 2
          %s255 = sadd.s32 %s253, %s254
          %s256 = smul.addr %s249, 4
          %s257 = sadd.s32 %s255, %s256
          %s258 = smul.addr %s257, 8
          %s259 = scalar_lea.vmem %s1, %s258
          %s260 = smul.u32 2, %s23
        $region24: #{tpu_custom_call.1} parent=15 // pred_fallthru
          _
        // Predicated region
        $region25: #{tpu_custom_call.1} parent=15 // pred_check
          %p261 = pneg %p117
        $region26: #{tpu_custom_call.1} parent=15 // pred_check_branch
          %263 = sbr.rel (%p261) target = $region28
        $region27: #{tpu_custom_call.1} parent=15 // pred_region
          %s264 = smul.u32 2, %s23
          %p265 = scmp.lt.s32.totalorder %s21, 1
          %s266 = scalar_select %p265, %s21, 1
          %p267 = scmp.lt.s32.totalorder %s22, 1
          %s268 = scalar_select %p267, %s22, 1
          %p269 = scmp.lt.s32.totalorder %s264, 1
          %s270 = scalar_select %p269, %s264, 1
          %s271 = smul.addr %s268, 2
          %s272 = sadd.s32 %s270, %s271
          %s273 = smul.addr %s266, 4
          %s274 = sadd.s32 %s272, %s273
          %s275 = smul.addr %s274, 2
          %s276 = scalar_lea.vmem %s2, %s275
          %s277 = smul.u32 2, %s23
        $region28: #{tpu_custom_call.1} parent=15 // pred_fallthru
          _
        // Predicated region
        $region29: #{tpu_custom_call.1} parent=15 // pred_check
          %p278 = pneg %p147
        $region30: #{tpu_custom_call.1} parent=15 // pred_check_branch
          %280 = sbr.rel (%p278) target = $region32
        $region31: #{tpu_custom_call.1} parent=15 // pred_region
          %s281 = smul.u32 2, %s23
          %p282 = scmp.lt.s32.totalorder %s21, 1
          %s283 = scalar_select %p282, %s21, 1
          %p284 = scmp.lt.s32.totalorder %s22, 1
          %s285 = scalar_select %p284, %s22, 1
          %p286 = scmp.lt.s32.totalorder %s281, 1
          %s287 = scalar_select %p286, %s281, 1
          %s288 = smul.addr %s285, 4
          %s289 = sadd.s32 %s287, %s288
          %s290 = smul.addr %s283, 8
          %s291 = sadd.s32 %s289, %s290
          %s292 = smul.addr %s291, 8
          %s293 = scalar_lea.vmem %s3, %s292
          %s294 = smul.u32 2, %s23
        $region32: #{tpu_custom_call.1} parent=15 // pred_fallthru
          _
        // Predicated region
        $region33: #{tpu_custom_call.1} parent=15 // pred_check
          %p295 = pneg %p175
        $region34: #{tpu_custom_call.1} parent=15 // pred_check_branch
          %297 = sbr.rel (%p295) target = $region36
        $region35: #{tpu_custom_call.1} parent=15 // pred_region
          %s298 = smul.u32 2, %s23
          %p299 = scmp.lt.s32.totalorder %s22, 1
          %s300 = scalar_select %p299, %s22, 1
          %p301 = scmp.lt.s32.totalorder %s298, 1
          %s302 = scalar_select %p301, %s298, 1
          %s303 = smul.addr %s300, 2
          %s304 = sadd.s32 %s302, %s303
          %s305 = scalar_lea.vmem %s4, %s304
          %s306 = smul.u32 2, %s23
        $region36: #{tpu_custom_call.1} parent=15 // pred_fallthru
          _
      $region16: #{tpu_custom_call.1} parent=5 // pred_fallthru
        _
      %p307 = scmp.le.s32.totalorder 1, %s14
      %p308 = scmp.lt.s32.totalorder %s14, 5
      %p309 = pnand %p307, %p308
      %p310 = pneg %p309
      // Predicated region
      $region37: #{tpu_custom_call.1} parent=5 // pred_check
        _
      $region38: #{tpu_custom_call.1} parent=5 // pred_check_branch
        %312 = sbr.rel (%p309) target = $region40
      $region39: #{tpu_custom_call.1} parent=5 // pred_region
        %s313 = ssub.s32 %s14, 1
        %s314 = smul.u32 2, %s26
        %p315 = scmp.lt.s32.totalorder %s24, 1
        %s316 = scalar_select %p315, %s24, 1
        %p317 = scmp.lt.s32.totalorder %s25, 1
        %s318 = scalar_select %p317, %s25, 1
        %p319 = scmp.lt.s32.totalorder %s314, 1
        %s320 = scalar_select %p319, %s314, 1
        %s321 = smul.addr %s318, 2
        %s322 = sadd.s32 %s320, %s321
        %s323 = smul.addr %s316, 4
        %s324 = sadd.s32 %s322, %s323
        %s325 = scalar_lea.vmem %s0, %s324
        %p326 = pneg %p63
        %p327 = pneg %p60
        %s328 = smul.u32 2, %s26
        %p329 = scmp.lt.s32.totalorder %s24, 1
        %s330 = scalar_select %p329, %s24, 1
        %p331 = scmp.lt.s32.totalorder %s25, 1
        %s332 = scalar_select %p331, %s25, 1
        %p333 = scmp.lt.s32.totalorder %s328, 1
        %s334 = scalar_select %p333, %s328, 1
        %s335 = smul.addr %s332, 2
        %s336 = sadd.s32 %s334, %s335
        %s337 = smul.addr %s330, 4
        %s338 = sadd.s32 %s336, %s337
        %s339 = smul.addr %s338, 8
        %s340 = scalar_lea.vmem %s1, %s339
        %p341 = pneg %p93
        %p342 = pneg %p90
        %s343 = smul.u32 2, %s26
        %p344 = scmp.lt.s32.totalorder %s24, 1
        %s345 = scalar_select %p344, %s24, 1
        %p346 = scmp.lt.s32.totalorder %s25, 1
        %s347 = scalar_select %p346, %s25, 1
        %p348 = scmp.lt.s32.totalorder %s343, 1
        %s349 = scalar_select %p348, %s343, 1
        %s350 = smul.addr %s347, 2
        %s351 = sadd.s32 %s349, %s350
        %s352 = smul.addr %s345, 4
        %s353 = sadd.s32 %s351, %s352
        %s354 = smul.addr %s353, 2
        %s355 = scalar_lea.vmem %s2, %s354
        %p356 = pneg %p123
        %p357 = pneg %p120
        %s358 = smul.u32 2, %s26
        %p359 = scmp.lt.s32.totalorder %s24, 1
        %s360 = scalar_select %p359, %s24, 1
        %p361 = scmp.lt.s32.totalorder %s25, 1
        %s362 = scalar_select %p361, %s25, 1
        %p363 = scmp.lt.s32.totalorder %s358, 1
        %s364 = scalar_select %p363, %s358, 1
        %s365 = smul.addr %s362, 4
        %s366 = sadd.s32 %s364, %s365
        %s367 = smul.addr %s360, 8
        %s368 = sadd.s32 %s366, %s367
        %s369 = smul.addr %s368, 8
        %s370 = scalar_lea.vmem %s3, %s369
        %p371 = pneg %p153
        %p372 = pneg %p150
        %s373 = smul.u32 2, %s26
        %p374 = scmp.lt.s32.totalorder %s25, 1
        %s375 = scalar_select %p374, %s25, 1
        %p376 = scmp.lt.s32.totalorder %s373, 1
        %s377 = scalar_select %p376, %s373, 1
        %s378 = smul.addr %s375, 2
        %s379 = sadd.s32 %s377, %s378
        %s380 = scalar_lea.vmem %s4, %s379
        %p381 = pneg %p181
        %p382 = pneg %p178
        %p383 = pneg %p209
        %p384 = pneg %p206
        %s385 = sand.u32 %s196, 1
        %s386 = scalar_lea.sflag [#allocation3], %s385
        %s387 = sand.u32 %s196, 1
        %s388 = scalar_lea.vmem [#allocation2], %s387
        %s389 = smul.u32 2, %s26
        %p390 = scmp.lt.s32.totalorder %s24, 1
        %s391 = scalar_select %p390, %s24, 1
        %p392 = scmp.lt.s32.totalorder %s25, 1
        %s393 = scalar_select %p392, %s25, 1
        %p394 = scmp.lt.s32.totalorder %s389, 1
        %s395 = scalar_select %p394, %s389, 1
        %s396 = smul.addr %s393, 2
        %s397 = sadd.s32 %s395, %s396
        %s398 = smul.addr %s391, 4
        %s399 = sadd.s32 %s397, %s398
        %s400 = scalar_lea.vmem %s0, %s399
        %s401 = smul.u32 2, %s26
        %s402 = smul.u32 2, %s26
        %p403 = scmp.lt.s32.totalorder %s24, 1
        %s404 = scalar_select %p403, %s24, 1
        %p405 = scmp.lt.s32.totalorder %s25, 1
        %s406 = scalar_select %p405, %s25, 1
        %p407 = scmp.lt.s32.totalorder %s402, 1
        %s408 = scalar_select %p407, %s402, 1
        %s409 = smul.addr %s406, 2
        %s410 = sadd.s32 %s408, %s409
        %s411 = smul.addr %s404, 4
        %s412 = sadd.s32 %s410, %s411
        %s413 = smul.addr %s412, 8
        %s414 = scalar_lea.vmem %s1, %s413
        %s415 = smul.u32 2, %s26
        %s416 = smul.u32 2, %s26
        %p417 = scmp.lt.s32.totalorder %s24, 1
        %s418 = scalar_select %p417, %s24, 1
        %p419 = scmp.lt.s32.totalorder %s25, 1
        %s420 = scalar_select %p419, %s25, 1
        %p421 = scmp.lt.s32.totalorder %s416, 1
        %s422 = scalar_select %p421, %s416, 1
        %s423 = smul.addr %s420, 2
        %s424 = sadd.s32 %s422, %s423
        %s425 = smul.addr %s418, 4
        %s426 = sadd.s32 %s424, %s425
        %s427 = smul.addr %s426, 2
        %s428 = scalar_lea.vmem %s2, %s427
        %s429 = smul.u32 2, %s26
        %s430 = smul.u32 2, %s26
        %p431 = scmp.lt.s32.totalorder %s24, 1
        %s432 = scalar_select %p431, %s24, 1
        %p433 = scmp.lt.s32.totalorder %s25, 1
        %s434 = scalar_select %p433, %s25, 1
        %p435 = scmp.lt.s32.totalorder %s430, 1
        %s436 = scalar_select %p435, %s430, 1
        %s437 = smul.addr %s434, 4
        %s438 = sadd.s32 %s436, %s437
        %s439 = smul.addr %s432, 8
        %s440 = sadd.s32 %s438, %s439
        %s441 = smul.addr %s440, 8
        %s442 = scalar_lea.vmem %s3, %s441
        %s443 = smul.u32 2, %s26
        %s444 = smul.u32 2, %s26
        %p445 = scmp.lt.s32.totalorder %s25, 1
        %s446 = scalar_select %p445, %s25, 1
        %p447 = scmp.lt.s32.totalorder %s444, 1
        %s448 = scalar_select %p447, %s444, 1
        %s449 = smul.addr %s446, 2
        %s450 = sadd.s32 %s448, %s449
        %s451 = scalar_lea.vmem %s4, %s450
        %s452 = smul.u32 2, %s26
        %p453 = scmp.eq.s32.totalorder %s26, 0
        // Predicated region
        $region41: #{tpu_custom_call.1} parent=39 // pred_check
          %p454 = pneg %p453
        $region42: #{tpu_custom_call.1} parent=39 // pred_check_branch
          %456 = sbr.rel (%p454) target = $region44
        $region43: #{tpu_custom_call.1} parent=39 // pred_region
          %vm457 = vcmask 24576
          %458 = vst.msk [vmem:[%s388] sm:$0x1] %vm457, 0.0
        $region44: #{tpu_custom_call.1} parent=39 // pred_fallthru
          _
        %s459 = scalar_lea.vmem %s442, 7
        %v460 = vld [vmem:[%s459] ss:$8 sm:$0x3]
        %s461 = scalar_lea.vmem %s442, 16
        %v462 = vld [vmem:[%s461] ss:$8 sm:$0x3]
        %v463 = vld [vmem:[%s400] sm:$0x3]
        %vm464 = vcmp.gt.f32.partialorder %v460, 0.0
        %vm465 = vcmp.gt.f32.partialorder %v462, 0.0
        %vm466 = vmor %vm464, %vm465
        %v467 = vsel %vm466, 1, 0
        %v468 = vcvt.s32.f32 %v467
        %v469 = vmul.f32 %v460, %v468
        %v470 = vsel %vm464, 1, 0
        %v471 = vcvt.s32.f32 %v470
        %v472 = vsel %vm465, 1, 0
        %v473 = vcvt.s32.f32 %v472
        %v474 = vmul.f32 %v471, 50.0
        %v475 = vadd.f32 %v474, %v473
        %v476 = vand.u32 2147483647, %v463
        %v477 = vsub.f32 0.0, %v476
        %v478 = vmul.f32 %v477, 1.442695
        %v479 = vpow.pop %v478
        %v480 = vmax.f32 %v463, 0.0
        %v481 = vmul.f32 %v463, %v469
        %v482 = vsub.f32 %v480, %v481
        %v483 = vadd.f32 %v479, 1.0
        %v484 = vlog2.pop %v483
        %v485 = vmul.f32 %v484, 0.6931472
        %v486 = vadd.f32 %v482, %v485
        %v487 = vrcp.pop %v483
        %vm488 = vcmp.ge.f32.partialorder %v463, 0.0
        %v489 = vsel %vm488, 1.0, %v479
        %v490 = vmul.f32 %v489, %v487
        %v491 = vmul.f32 %v469, %v490
        %v492 = vsub.f32 1.0, %v469
        %v493 = vsub.f32 1.0, %v490
        %v494 = vmul.f32 %v492, %v493
        %v495 = vadd.f32 %v491, %v494
        %v496 = vsub.f32 1.0, %v495
        %v497 = vmul.f32 %v496, %v496
        %v498 = vmul.f32 %v469, 0.25
        %v499 = vmul.f32 %v492, 0.75
        %v500 = vadd.f32 %v498, %v499
        %v501 = vmul.f32 %v497, %v500
        %v502 = vmul.f32 %v501, %v486
        %v503 = vmul.f32 %v502, %v475
        %v505 = vlaneseq
        %v506 = vshrl.u32 %v505, 7
        %v507 = vsub.s32 0, %v506
        %v508 = vrot.slane %v503, %v507
        %v509 = vlaneseq
        %v510 = vshrl.u32 %v509, 7
        %v511 = vsub.s32 1, %v510
        %v512 = vrot.slane %v503, %v511
        %vm515 = vcmask 1040384
        %v516 = vsel %vm515, %v508, 0.0
        %v517 = vsel %vm515, %v512, 0.0
        %v518 = vadd.f32 %v516, %v517
        %519 = vadd.xlane.f32.xlu0 %v518
        %v520 = vpop.xlane.xlu0 %519
        %v522 = vlaneseq
        %v523 = vshrl.u32 %v522, 7
        %v524 = vsub.s32 0, %v523
        %v525 = vrot.slane %v471, %v524
        %v526 = vlaneseq
        %v527 = vshrl.u32 %v526, 7
        %v528 = vsub.s32 1, %v527
        %v529 = vrot.slane %v471, %v528
        %v532 = vsel %vm515, %v525, 0.0
        %v533 = vsel %vm515, %v529, 0.0
        %v534 = vadd.f32 %v532, %v533
        %535 = vadd.xlane.f32.xlu0 %v534
        %v536 = vpop.xlane.xlu0 %535
        %v537 = vld [vmem:[%s414] ss:$8 sm:$0x3]
        %v538 = vld [vmem:[%s442] ss:$8 sm:$0x3]
        %v539 = vsub.f32 %v537, %v538
        %v540 = vand.u32 2147483647, %v539
        %vm541 = vcmp.le.f32.partialorder %v540, 0.11111111
        %v542 = vsel %vm541, 1, 0
        %v543 = vcvt.s32.f32 %v542
        %v544 = vmul.f32 %v540, 3.0
        %v545 = vmul.f32 %v544, %v544
        %v546 = vmul.f32 %v545, 0.5
        %v547 = vsub.f32 %v540, 0.055555556
        %v548 = vmul.f32 %v543, %v546
        %v549 = vsub.f32 1.0, %v543
        %v550 = vmul.f32 %v549, %v547
        %v551 = vadd.f32 %v548, %v550
        %v552 = vadd.f32 %v551, 0.0
        %s553 = scalar_lea.vmem %s414, 1
        %v554 = vld [vmem:[%s553] ss:$8 sm:$0x3]
        %s555 = scalar_lea.vmem %s442, 1
        %v556 = vld [vmem:[%s555] ss:$8 sm:$0x3]
        %v557 = vsub.f32 %v554, %v556
        %v558 = vand.u32 2147483647, %v557
        %vm559 = vcmp.le.f32.partialorder %v558, 0.11111111
        %v560 = vsel %vm559, 1, 0
        %v561 = vcvt.s32.f32 %v560
        %v562 = vmul.f32 %v558, 3.0
        %v563 = vmul.f32 %v562, %v562
        %v564 = vmul.f32 %v563, 0.5
        %v565 = vsub.f32 %v558, 0.055555556
        %v566 = vmul.f32 %v561, %v564
        %v567 = vsub.f32 1.0, %v561
        %v568 = vmul.f32 %v567, %v565
        %v569 = vadd.f32 %v566, %v568
        %v570 = vadd.f32 %v552, %v569
        %s571 = scalar_lea.vmem %s414, 2
        %v572 = vld [vmem:[%s571] ss:$8 sm:$0x3]
        %s573 = scalar_lea.vmem %s442, 2
        %v574 = vld [vmem:[%s573] ss:$8 sm:$0x3]
        %v575 = vsub.f32 %v572, %v574
        %v576 = vand.u32 2147483647, %v575
        %vm577 = vcmp.le.f32.partialorder %v576, 0.11111111
        %v578 = vsel %vm577, 1, 0
        %v579 = vcvt.s32.f32 %v578
        %v580 = vmul.f32 %v576, 3.0
        %v581 = vmul.f32 %v580, %v580
        %v582 = vmul.f32 %v581, 0.5
        %v583 = vsub.f32 %v576, 0.055555556
        %v584 = vmul.f32 %v579, %v582
        %v585 = vsub.f32 1.0, %v579
        %v586 = vmul.f32 %v585, %v583
        %v587 = vadd.f32 %v584, %v586
        %v588 = vadd.f32 %v570, %v587
        %s589 = scalar_lea.vmem %s414, 3
        %v590 = vld [vmem:[%s589] ss:$8 sm:$0x3]
        %s591 = scalar_lea.vmem %s442, 3
        %v592 = vld [vmem:[%s591] ss:$8 sm:$0x3]
        %v593 = vsub.f32 %v590, %v592
        %v594 = vand.u32 2147483647, %v593
        %vm595 = vcmp.le.f32.partialorder %v594, 0.11111111
        %v596 = vsel %vm595, 1, 0
        %v597 = vcvt.s32.f32 %v596
        %v598 = vmul.f32 %v594, 3.0
        %v599 = vmul.f32 %v598, %v598
        %v600 = vmul.f32 %v599, 0.5
        %v601 = vsub.f32 %v594, 0.055555556
        %v602 = vmul.f32 %v597, %v600
        %v603 = vsub.f32 1.0, %v597
        %v604 = vmul.f32 %v603, %v601
        %v605 = vadd.f32 %v602, %v604
        %v606 = vadd.f32 %v588, %v605
        %s607 = scalar_lea.vmem %s414, 4
        %v608 = vld [vmem:[%s607] ss:$8 sm:$0x3]
        %s609 = scalar_lea.vmem %s442, 4
        %v610 = vld [vmem:[%s609] ss:$8 sm:$0x3]
        %v611 = vsub.f32 %v608, %v610
        %v612 = vand.u32 2147483647, %v611
        %vm613 = vcmp.le.f32.partialorder %v612, 0.11111111
        %v614 = vsel %vm613, 1, 0
        %v615 = vcvt.s32.f32 %v614
        %v616 = vmul.f32 %v612, 3.0
        %v617 = vmul.f32 %v616, %v616
        %v618 = vmul.f32 %v617, 0.5
        %v619 = vsub.f32 %v612, 0.055555556
        %v620 = vmul.f32 %v615, %v618
        %v621 = vsub.f32 1.0, %v615
        %v622 = vmul.f32 %v621, %v619
        %v623 = vadd.f32 %v620, %v622
        %v624 = vadd.f32 %v606, %v623
        %s625 = scalar_lea.vmem %s414, 5
        %v626 = vld [vmem:[%s625] ss:$8 sm:$0x3]
        %s627 = scalar_lea.vmem %s442, 5
        %v628 = vld [vmem:[%s627] ss:$8 sm:$0x3]
        %v629 = vsub.f32 %v626, %v628
        %v630 = vand.u32 2147483647, %v629
        %vm631 = vcmp.le.f32.partialorder %v630, 0.11111111
        %v632 = vsel %vm631, 1, 0
        %v633 = vcvt.s32.f32 %v632
        %v634 = vmul.f32 %v630, 3.0
        %v635 = vmul.f32 %v634, %v634
        %v636 = vmul.f32 %v635, 0.5
        %v637 = vsub.f32 %v630, 0.055555556
        %v638 = vmul.f32 %v633, %v636
        %v639 = vsub.f32 1.0, %v633
        %v640 = vmul.f32 %v639, %v637
        %v641 = vadd.f32 %v638, %v640
        %v642 = vadd.f32 %v624, %v641
        %s643 = scalar_lea.vmem %s414, 6
        %v644 = vld [vmem:[%s643] ss:$8 sm:$0x3]
        %s645 = scalar_lea.vmem %s442, 6
        %v646 = vld [vmem:[%s645] ss:$8 sm:$0x3]
        %v647 = vand.u32 2147483647, %v644
        %vm648 = vcmp.le.f32.partialorder %v647, 0.7853982
        %vm649 = vcmp.lt.s32.totalorder %v644, 0
        %v650 = vand.u32 %v644, 2139095040
        %v651 = vshrl.u32 %v650, 23
        %v652 = vsub.s32 %v651, 127
        %v653 = vand.u32 2147483647, %v644
        %v654 = vand.u32 %v653, 8388607
        %v655 = vor.u32 %v654, 8388608
        %v656 = vsub.s32 0, %v655
        %v657 = vadd.s32 %v652, 1
        %vm658 = vcmp.gt.s32.totalorder %v657, 0
        %v659 = vsel %vm658, %v657, 0
        %v660 = vshrl.u32 %v659, 5
        %v661 = vand.u32 %v659, 31
        %v662 = vsub.s32 32, %v661
        %v663 = vshrl.u32 683565275, %v662
        %v664 = vshll.u32 683565275, %v661
        %v665 = vshrl.u32 2475754826, %v662
        %v666 = vor.u32 %v664, %v665
        %v667 = vshll.u32 2475754826, %v661
        %v668 = vshrl.u32 2131351028, %v662
        %v669 = vor.u32 %v667, %v668
        %v670 = vshll.u32 2131351028, %v661
        %v671 = vshrl.u32 2102212464, %v662
        %v672 = vor.u32 %v670, %v671
        %v673 = vshll.u32 2102212464, %v661
        %v674 = vshrl.u32 920167782, %v662
        %v675 = vor.u32 %v673, %v674
        %v676 = vshll.u32 920167782, %v661
        %v677 = vshrl.u32 1326507024, %v662
        %v678 = vor.u32 %v676, %v677
        %vm679 = vcmp.lt.s32.totalorder %v660, 1
        %vm680 = vcmp.lt.s32.totalorder %v660, 2
        %vm681 = vcmp.lt.s32.totalorder %v660, 3
        %vm682 = vcmp.lt.s32.totalorder %v660, 4
        %v683 = vsel %vm679, %v663, %v666
        %v684 = vsel %vm682, %v672, 2102212464
        %v685 = vsel %vm681, %v669, %v684
        %v686 = vsel %vm680, %v683, %v685
        %v687 = vsel %vm679, %v666, %v669
        %v688 = vsel %vm682, %v675, 920167782
        %v689 = vsel %vm681, %v672, %v688
        %v690 = vsel %vm680, %v687, %v689
        %v691 = vsel %vm679, %v669, %v672
        %v692 = vsel %vm682, %v678, 1326507024
        %v693 = vsel %vm681, %v675, %v692
        %v694 = vsel %vm680, %v691, %v693
        %v695 = vshll.u32 %v655, 8
        %v696 = vmul.u32.u64.compose %v695, %v694
        %v697 = vextract.low.u32 %v696
        %v698 = vextract.high.u32 %v696
        %v699 = vmul.u32.u64.compose %v695, %v690
        %v700 = vextract.low.u32 %v699
        %v701 = vextract.high.u32 %v699
        %v702 = vmul.u32 %v695, %v686
        %v703 = vadd.s32 %v698, %v700
        %vm704 = vc.u32 %v698, %v700
        %v705 = vadd.s32 %v701, 1
        %v706 = vsel %vm704, %v705, %v701
        %v707 = vadd.s32 %v702, %v706
        %v708 = vadd.s32 %v707, 536870912
        %v709 = vshrl.u32 %v708, 30
        %v710 = vshll.u32 %v709, 30
        %v711 = vsub.s32 %v707, %v710
        %vm712 = vcmp.lt.s32.totalorder %v711, 0
        %v713 = vsub.s32 0, %v711
        %v714 = vsel %vm712, %v713, %v711
        %v715 = vclz %v714
        %v716 = vsub.s32 %v715, 2
        %vm717 = vcmp.gt.s32.totalorder 0, %v716
        %v718 = vsel %vm717, 0, %v716
        %v719 = vsub.s32 32, %v718
        %v720 = vshll.u32 %v711, %v718
        %v721 = vshrl.u32 %v703, %v719
        %v722 = vor.u32 %v720, %v721
        %v723 = vsub.s32 4294967266, %v718
        %v724 = vadd.s32 %v723, 127
        %v725 = vshll.u32 %v724, 23
        %v726 = vor.u32 4788187, %v725
        %v727 = vand.u32 2147483647, %v726
        %v729 = vcvt.s32.f32 %v722
        %v730 = vmul.f32 %v729, %v727
        %v731 = vxor.u32 %v730, 2147483648
        %v732 = vsel %vm649, %v731, %v730
        %v733 = vsub.s32 4, %v709
        %v734 = vsel %vm649, %v733, %v709
        %v735 = vsel %vm648, %v644, %v732
        %v736 = vsel %vm648, 0, %v734
        %v737 = vcosq.f32.pop %v735
        %v738 = vsinq.f32.pop %v735
        %vm739 = vweird.f32 %v644
        %v740 = vand.u32 %v736, 3
        %vm741 = vcmp.lt.s32.totalorder %v740, 2
        %vm742 = vcmp.eq.s32.totalorder %v740, 0
        %v743 = vxor.u32 %v738, 2147483648
        %v744 = vsel %vm742, %v737, %v743
        %vm745 = vcmp.eq.s32.totalorder %v740, 2
        %v746 = vxor.u32 %v737, 2147483648
        %v747 = vsel %vm745, %v746, %v738
        %v748 = vsel %vm741, %v744, %v747
        %v749 = vsel %vm739, nan, %v748
        %v750 = vand.u32 2147483647, %v646
        %vm751 = vcmp.le.f32.partialorder %v750, 0.7853982
        %vm752 = vcmp.lt.s32.totalorder %v646, 0
        %v753 = vand.u32 %v646, 2139095040
        %v754 = vshrl.u32 %v753, 23
        %v755 = vsub.s32 %v754, 127
        %v756 = vand.u32 2147483647, %v646
        %v757 = vand.u32 %v756, 8388607
        %v758 = vor.u32 %v757, 8388608
        %v759 = vsub.s32 0, %v758
        %v760 = vadd.s32 %v755, 1
        %vm761 = vcmp.gt.s32.totalorder %v760, 0
        %v762 = vsel %vm761, %v760, 0
        %v763 = vshrl.u32 %v762, 5
        %v764 = vand.u32 %v762, 31
        %v765 = vsub.s32 32, %v764
        %v766 = vshrl.u32 683565275, %v765
        %v767 = vshll.u32 683565275, %v764
        %v768 = vshrl.u32 2475754826, %v765
        %v769 = vor.u32 %v767, %v768
        %v770 = vshll.u32 2475754826, %v764
        %v771 = vshrl.u32 2131351028, %v765
        %v772 = vor.u32 %v770, %v771
        %v773 = vshll.u32 2131351028, %v764
        %v774 = vshrl.u32 2102212464, %v765
        %v775 = vor.u32 %v773, %v774
        %v776 = vshll.u32 2102212464, %v764
        %v777 = vshrl.u32 920167782, %v765
        %v778 = vor.u32 %v776, %v777
        %v779 = vshll.u32 920167782, %v764
        %v780 = vshrl.u32 1326507024, %v765
        %v781 = vor.u32 %v779, %v780
        %vm782 = vcmp.lt.s32.totalorder %v763, 1
        %vm783 = vcmp.lt.s32.totalorder %v763, 2
        %vm784 = vcmp.lt.s32.totalorder %v763, 3
        %vm785 = vcmp.lt.s32.totalorder %v763, 4
        %v786 = vsel %vm782, %v766, %v769
        %v787 = vsel %vm785, %v775, 2102212464
        %v788 = vsel %vm784, %v772, %v787
        %v789 = vsel %vm783, %v786, %v788
        %v790 = vsel %vm782, %v769, %v772
        %v791 = vsel %vm785, %v778, 920167782
        %v792 = vsel %vm784, %v775, %v791
        %v793 = vsel %vm783, %v790, %v792
        %v794 = vsel %vm782, %v772, %v775
        %v795 = vsel %vm785, %v781, 1326507024
        %v796 = vsel %vm784, %v778, %v795
        %v797 = vsel %vm783, %v794, %v796
        %v798 = vshll.u32 %v758, 8
        %v799 = vmul.u32.u64.compose %v798, %v797
        %v800 = vextract.low.u32 %v799
        %v801 = vextract.high.u32 %v799
        %v802 = vmul.u32.u64.compose %v798, %v793
        %v803 = vextract.low.u32 %v802
        %v804 = vextract.high.u32 %v802
        %v805 = vmul.u32 %v798, %v789
        %v806 = vadd.s32 %v801, %v803
        %vm807 = vc.u32 %v801, %v803
        %v808 = vadd.s32 %v804, 1
        %v809 = vsel %vm807, %v808, %v804
        %v810 = vadd.s32 %v805, %v809
        %v811 = vadd.s32 %v810, 536870912
        %v812 = vshrl.u32 %v811, 30
        %v813 = vshll.u32 %v812, 30
        %v814 = vsub.s32 %v810, %v813
        %vm815 = vcmp.lt.s32.totalorder %v814, 0
        %v816 = vsub.s32 0, %v814
        %v817 = vsel %vm815, %v816, %v814
        %v818 = vclz %v817
        %v819 = vsub.s32 %v818, 2
        %vm820 = vcmp.gt.s32.totalorder 0, %v819
        %v821 = vsel %vm820, 0, %v819
        %v822 = vsub.s32 32, %v821
        %v823 = vshll.u32 %v814, %v821
        %v824 = vshrl.u32 %v806, %v822
        %v825 = vor.u32 %v823, %v824
        %v826 = vsub.s32 4294967266, %v821
        %v827 = vadd.s32 %v826, 127
        %v828 = vshll.u32 %v827, 23
        %v829 = vor.u32 4788187, %v828
        %v830 = vand.u32 2147483647, %v829
        %v832 = vcvt.s32.f32 %v825
        %v833 = vmul.f32 %v832, %v830
        %v834 = vxor.u32 %v833, 2147483648
        %v835 = vsel %vm752, %v834, %v833
        %v836 = vsub.s32 4, %v812
        %v837 = vsel %vm752, %v836, %v812
        %v838 = vsel %vm751, %v646, %v835
        %v839 = vsel %vm751, 0, %v837
        %v840 = vcosq.f32.pop %v838
        %v841 = vsinq.f32.pop %v838
        %vm842 = vweird.f32 %v646
        %v843 = vadd.s32 %v839, 3
        %v844 = vand.u32 %v843, 3
        %vm845 = vcmp.lt.s32.totalorder %v844, 2
        %vm846 = vcmp.eq.s32.totalorder %v844, 0
        %v847 = vxor.u32 %v841, 2147483648
        %v848 = vsel %vm846, %v840, %v847
        %vm849 = vcmp.eq.s32.totalorder %v844, 2
        %v850 = vxor.u32 %v840, 2147483648
        %v851 = vsel %vm849, %v850, %v841
        %v852 = vsel %vm845, %v848, %v851
        %v853 = vsel %vm842, nan, %v852
        %v854 = vmul.f32 %v749, %v853
        %v855 = vsub.f32 %v644, %v646
        %v856 = vand.u32 2147483647, %v855
        %vm857 = vcmp.le.f32.partialorder %v856, 0.7853982
        %vm858 = vcmp.lt.s32.totalorder %v855, 0
        %v859 = vand.u32 %v855, 2139095040
        %v860 = vshrl.u32 %v859, 23
        %v861 = vsub.s32 %v860, 127
        %v862 = vand.u32 2147483647, %v855
        %v863 = vand.u32 %v862, 8388607
        %v864 = vor.u32 %v863, 8388608
        %v865 = vsub.s32 0, %v864
        %v866 = vadd.s32 %v861, 1
        %vm867 = vcmp.gt.s32.totalorder %v866, 0
        %v868 = vsel %vm867, %v866, 0
        %v869 = vshrl.u32 %v868, 5
        %v870 = vand.u32 %v868, 31
        %v871 = vsub.s32 32, %v870
        %v872 = vshrl.u32 683565275, %v871
        %v873 = vshll.u32 683565275, %v870
        %v874 = vshrl.u32 2475754826, %v871
        %v875 = vor.u32 %v873, %v874
        %v876 = vshll.u32 2475754826, %v870
        %v877 = vshrl.u32 2131351028, %v871
        %v878 = vor.u32 %v876, %v877
        %v879 = vshll.u32 2131351028, %v870
        %v880 = vshrl.u32 2102212464, %v871
        %v881 = vor.u32 %v879, %v880
        %v882 = vshll.u32 2102212464, %v870
        %v883 = vshrl.u32 920167782, %v871
        %v884 = vor.u32 %v882, %v883
        %v885 = vshll.u32 920167782, %v870
        %v886 = vshrl.u32 1326507024, %v871
        %v887 = vor.u32 %v885, %v886
        %vm888 = vcmp.lt.s32.totalorder %v869, 1
        %vm889 = vcmp.lt.s32.totalorder %v869, 2
        %vm890 = vcmp.lt.s32.totalorder %v869, 3
        %vm891 = vcmp.lt.s32.totalorder %v869, 4
        %v892 = vsel %vm888, %v872, %v875
        %v893 = vsel %vm891, %v881, 2102212464
        %v894 = vsel %vm890, %v878, %v893
        %v895 = vsel %vm889, %v892, %v894
        %v896 = vsel %vm888, %v875, %v878
        %v897 = vsel %vm891, %v884, 920167782
        %v898 = vsel %vm890, %v881, %v897
        %v899 = vsel %vm889, %v896, %v898
        %v900 = vsel %vm888, %v878, %v881
        %v901 = vsel %vm891, %v887, 1326507024
        %v902 = vsel %vm890, %v884, %v901
        %v903 = vsel %vm889, %v900, %v902
        %v904 = vshll.u32 %v864, 8
        %v905 = vmul.u32.u64.compose %v904, %v903
        %v906 = vextract.low.u32 %v905
        %v907 = vextract.high.u32 %v905
        %v908 = vmul.u32.u64.compose %v904, %v899
        %v909 = vextract.low.u32 %v908
        %v910 = vextract.high.u32 %v908
        %v911 = vmul.u32 %v904, %v895
        %v912 = vadd.s32 %v907, %v909
        %vm913 = vc.u32 %v907, %v909
        %v914 = vadd.s32 %v910, 1
        %v915 = vsel %vm913, %v914, %v910
        %v916 = vadd.s32 %v911, %v915
        %v917 = vadd.s32 %v916, 536870912
        %v918 = vshrl.u32 %v917, 30
        %v919 = vshll.u32 %v918, 30
        %v920 = vsub.s32 %v916, %v919
        %vm921 = vcmp.lt.s32.totalorder %v920, 0
        %v922 = vsub.s32 0, %v920
        %v923 = vsel %vm921, %v922, %v920
        %v924 = vclz %v923
        %v925 = vsub.s32 %v924, 2
        %vm926 = vcmp.gt.s32.totalorder 0, %v925
        %v927 = vsel %vm926, 0, %v925
        %v928 = vsub.s32 32, %v927
        %v929 = vshll.u32 %v920, %v927
        %v930 = vshrl.u32 %v912, %v928
        %v931 = vor.u32 %v929, %v930
        %v932 = vsub.s32 4294967266, %v927
        %v933 = vadd.s32 %v932, 127
        %v934 = vshll.u32 %v933, 23
        %v935 = vor.u32 4788187, %v934
        %v936 = vand.u32 2147483647, %v935
        %v938 = vcvt.s32.f32 %v931
        %v939 = vmul.f32 %v938, %v936
        %v940 = vxor.u32 %v939, 2147483648
        %v941 = vsel %vm858, %v940, %v939
        %v942 = vsub.s32 4, %v918
        %v943 = vsel %vm858, %v942, %v918
        %v944 = vsel %vm857, %v855, %v941
        %v945 = vsel %vm857, 0, %v943
        %v946 = vcosq.f32.pop %v944
        %v947 = vsinq.f32.pop %v944
        %vm948 = vweird.f32 %v855
        %v949 = vadd.s32 %v945, 3
        %v950 = vand.u32 %v949, 3
        %vm951 = vcmp.lt.s32.totalorder %v950, 2
        %vm952 = vcmp.eq.s32.totalorder %v950, 0
        %v953 = vxor.u32 %v947, 2147483648
        %v954 = vsel %vm952, %v946, %v953
        %vm955 = vcmp.eq.s32.totalorder %v950, 2
        %v956 = vxor.u32 %v946, 2147483648
        %v957 = vsel %vm955, %v956, %v947
        %v958 = vsel %vm951, %v954, %v957
        %v959 = vsel %vm948, nan, %v958
        %v960 = vand.u32 2147483647, %v959
        %vm961 = vcmp.le.f32.partialorder %v960, 0.11111111
        %v962 = vsel %vm961, 1, 0
        %v963 = vcvt.s32.f32 %v962
        %v964 = vmul.f32 %v960, 3.0
        %v965 = vmul.f32 %v964, %v964
        %v966 = vmul.f32 %v965, 0.5
        %v967 = vsub.f32 %v960, 0.055555556
        %v968 = vmul.f32 %v963, %v966
        %v969 = vsub.f32 1.0, %v963
        %v970 = vmul.f32 %v969, %v967
        %v971 = vadd.f32 %v968, %v970
        %v972 = vadd.f32 %v642, %v971
        %v973 = vmul.f32 %v972, %v471
        %v975 = vlaneseq
        %v976 = vshrl.u32 %v975, 7
        %v977 = vsub.s32 0, %v976
        %v978 = vrot.slane %v973, %v977
        %v979 = vlaneseq
        %v980 = vshrl.u32 %v979, 7
        %v981 = vsub.s32 1, %v980
        %v982 = vrot.slane %v973, %v981
        %v985 = vsel %vm515, %v978, 0.0
        %v986 = vsel %vm515, %v982, 0.0
        %v987 = vadd.f32 %v985, %v986
        %988 = vadd.xlane.f32.xlu0 %v987
        %v989 = vpop.xlane.xlu0 %988
        %v990 = vld [vmem:[%s451] sm:$0x3]
        %v991 = vadd.f32 %v854, %v990
        %vm992 = vcmp.gt.f32.partialorder %v991, 0.0
        %v993 = vld [vmem:[%s428] ss:$2 sm:$0x3]
        %s994 = scalar_lea.vmem %s428, 1
        %v995 = vld [vmem:[%s994] ss:$2 sm:$0x3]
        %v996 = vsub.f32 %v993, %v995
        %v997 = vsub.f32 %v995, %v993
        %v998 = vsel %vm992, %v996, %v997
        %v999 = vmax.f32 %v998, 0.0
        %v1000 = vand.u32 2147483647, %v998
        %v1001 = vsub.f32 0.0, %v1000
        %v1002 = vmul.f32 %v1001, 1.442695
        %v1003 = vpow.pop %v1002
        %v1004 = vadd.f32 %v1003, 1.0
        %v1005 = vlog2.pop %v1004
        %v1006 = vmul.f32 %v1005, 0.6931472
        %v1007 = vadd.f32 %v999, %v1006
        %v1008 = vmul.f32 %v1007, %v471
        %v1010 = vlaneseq
        %v1011 = vshrl.u32 %v1010, 7
        %v1012 = vsub.s32 0, %v1011
        %v1013 = vrot.slane %v1008, %v1012
        %v1014 = vlaneseq
        %v1015 = vshrl.u32 %v1014, 7
        %v1016 = vsub.s32 1, %v1015
        %v1017 = vrot.slane %v1008, %v1016
        %v1020 = vsel %vm515, %v1013, 0.0
        %v1021 = vsel %vm515, %v1017, 0.0
        %v1022 = vadd.f32 %v1020, %v1021
        %1023 = vadd.xlane.f32.xlu0 %v1022
        %v1024 = vpop.xlane.xlu0 %1023
        %v1025 = vld [vmem:[%s388] sm:$0x1]
        %v1026 = vadd.f32 %v1025, %v520
        %vm1027 = vcmask 0
        %1028 = vst.msk [vmem:[%s388] sm:$0x1] %vm1027, %v1026
        %v1029 = vld [vmem:[%s388] sm:$0x1]
        %v1030 = vadd.f32 %v1029, %v989
        %vm1031 = vcmask 8200
        %1032 = vst.msk [vmem:[%s388] sm:$0x1] %vm1031, %v1030
        %v1033 = vld [vmem:[%s388] sm:$0x1]
        %v1034 = vadd.f32 %v1033, %v1024
        %vm1035 = vcmask 16400
        %1036 = vst.msk [vmem:[%s388] sm:$0x1] %vm1035, %v1034
        %v1037 = vld [vmem:[%s388] sm:$0x1]
        %v1038 = vadd.f32 %v1037, %v536
        %vm1039 = vcmask 24600
        %1040 = vst.msk [vmem:[%s388] sm:$0x1] %vm1039, %v1038
        %s1041 = sand.u32 %s196, 1
        %s1042 = scalar_lea.sflag [#allocation3], %s1041
        %s1043 = sand.u32 %s196, 1
        %s1044 = scalar_lea.vmem [#allocation2], %s1043
        // Predicated region
        $region45: #{tpu_custom_call.1} parent=39 // pred_check
          %p1045 = pneg %p206
        $region46: #{tpu_custom_call.1} parent=39 // pred_check_branch
          %1047 = sbr.rel (%p1045) target = $region48
        $region47: #{tpu_custom_call.1} parent=39 // pred_region
          %s1049 = ssub.s32 16, 16
          %1050 = vsyncadd %s1042, %s1049
          %s1051 = smul.addr %s24, 2
          %s1052 = sadd.s32 %s25, %s1051
          %s1053 = smul.addr %s1052, 16
          %s1054 = scalar_lea.hbm %s5, %s1053
          %s1056 = sshll.u32 %s1044, 4
          %s1057 = int_to_ptr.vmem [resolvable:$true] %s1056
          %1059 = dma.vmem_to_hbm [thread:$0]  %s1057, 16, %s1054, %s1042
        $region48: #{tpu_custom_call.1} parent=39 // pred_fallthru
          _
      $region40: #{tpu_custom_call.1} parent=5 // pred_fallthru
        _
      %p1060 = scmp.le.s32.totalorder 2, %s14
      // Predicated region
      $region49: #{tpu_custom_call.1} parent=5 // pred_check
        %p1061 = pneg %p1060
      $region50: #{tpu_custom_call.1} parent=5 // pred_check_branch
        %1063 = sbr.rel (%p1061) target = $region52
      $region51: #{tpu_custom_call.1} parent=5 // pred_region
        %s1064 = ssub.s32 %s14, 2
        // Predicated region
        $region53: #{tpu_custom_call.1} parent=51 // pred_check
          %p1065 = pneg %p212
        $region54: #{tpu_custom_call.1} parent=51 // pred_check_branch
          %1067 = sbr.rel (%p1065) target = $region56
        $region55: #{tpu_custom_call.1} parent=51 // pred_region
          %s1068 = sand.u32 %s197, 1
          %s1069 = scalar_lea.sflag [#allocation3], %s1068
          %s1070 = sand.u32 %s197, 1
          %s1071 = scalar_lea.vmem [#allocation2], %s1070
          %1072 = dma.done %s1069, 16
        $region56: #{tpu_custom_call.1} parent=51 // pred_fallthru
          _
      $region52: #{tpu_custom_call.1} parent=5 // pred_fallthru
        _
    $region6: #{tpu_custom_call.1} parent=1 // loop_footer
      %s18 = sadd.s32 1, %s14
    $region7: #{tpu_custom_call.1} parent=1 // loop_footer_branch
      %13 = sbr.rel target = $region3
    $region8: #{tpu_custom_call.1} parent=1 // loop_exit
      _
    %1073 = vsyncpa [#allocation3], 1
    %s1074 = scalar_lea.sflag [#allocation3], 1
    %1075 = vsyncpa %s1074, 1

</llo_original>
